<compile_context>
chip_gen: v7x
topology: tpu7x:2x2x1
jax: 0.10.0
libtpu: 0.0.40
codegen_flags: <defaults>
</compile_context>

<pallas_src>
import jax
import jax.numpy as jnp
from jax.experimental import pallas as pl
from jax.experimental.pallas import tpu as pltpu

OUT_PAD = 128   # lane-dense output width; real `labels` lanes sliced in glue
LANE = 128


# ----------------------------------------------------------------------------
# Kernel
# ----------------------------------------------------------------------------
def gnn_kernel(adj_ref, x_ref,
               wc1_ref, b1_ref,
               wc2_ref, b2_ref,
               wc3_ref, b3_ref,
               wlin_ref, blin_ref,
               out_ref):
    # Block-diagonal adjacency for GB packed graphs; bf16 in HBM/VMEM, exact
    # small-integer values, upcast once for f32 MXU accumulation.
    adj = adj_ref[...].astype(jnp.float32)          # (R, R)
    h = x_ref[...]                                  # (R, F_PAD) f32

    def graph_conv(h, wcat, b):
        # wcat = [W_root | W_nbr], each half padded to 128 lanes -> the split
        # below is a tile-aligned view, and both linear maps share one MXU push.
        hp = b.shape[-1]                            # padded hidden width (128)
        hw = jnp.dot(h, wcat, preferred_element_type=jnp.float32)       # (R, 2*hp)
        agg = jnp.dot(adj, hw[:, hp:], preferred_element_type=jnp.float32)
        return jnp.maximum(hw[:, :hp] + agg + b, 0.0)

    h = graph_conv(h, wc1_ref[...], b1_ref[...])
    h = graph_conv(h, wc2_ref[...], b2_ref[...])
    h = graph_conv(h, wc3_ref[...], b3_ref[...])

    # Per-graph global max / mean pooling (all R rows are real nodes).
    gb = out_ref.shape[0]
    r, hp = h.shape
    n = r // gb
    h3 = h.reshape(gb, n, hp)                       # node axis = sublane split
    max_p = jnp.max(h3, axis=1)                     # (gb, hp)
    mean_p = jnp.sum(h3, axis=1) * (1.0 / n)        # (gb, hp)
    pool = jnp.concatenate([max_p, mean_p], axis=-1)   # (gb, 2*hp), lane-aligned

    # Single MXU push into a sublane+lane-dense (gb, OUT_PAD) block.
    out_ref[...] = (jnp.dot(pool, wlin_ref[...], preferred_element_type=jnp.float32)
                    + blin_ref[...])


# ----------------------------------------------------------------------------
# Glue
# ----------------------------------------------------------------------------
def _round_up(v, m):
    return ((v + m - 1) // m) * m


def _build_adj(edge_index, n):
    """Dense adjacency A[dst, src] (with edge multiplicity) via scatter-add."""
    src, dst = edge_index[0], edge_index[1]
    return jnp.zeros((n, n), jnp.float32).at[dst, src].add(1.0)


def _pick_gb(g, n, target_rows=128):
    """Largest graphs-per-step divisor of g with gb*n <= target_rows, preferring
    a sublane-aligned (gb % 8 == 0) or full (gb == g) output block."""
    cands = [gb for gb in range(1, g + 1) if g % gb == 0 and gb * n <= target_rows]
    if not cands:
        return 1
    aligned = [gb for gb in cands if gb % 8 == 0 or gb == g]
    return max(aligned) if aligned else max(cands)


def pack_params(params):
    """Fuse per-layer [W_root | W_nbr] with 128-lane-padded halves; pad the
    final Linear to OUT_PAD lanes."""
    h = params["b1"].shape[-1]
    f = params["w1r"].shape[0]
    labels = params["blin"].shape[-1]
    f_pad = _round_up(f, LANE)
    h_pad = _round_up(h, LANE)

    def fuse(wr, wn, fin_pad):
        w = jnp.zeros((fin_pad, 2 * h_pad), jnp.float32)
        w = w.at[: wr.shape[0], :h].set(wr)
        w = w.at[: wn.shape[0], h_pad:h_pad + h].set(wn)
        return w

    def pad_bias(b):
        return jnp.zeros((1, h_pad), jnp.float32).at[:, :h].set(b)

    wlin = jnp.zeros((2 * h_pad, OUT_PAD), jnp.float32)
    wlin = wlin.at[:h, :labels].set(params["wlin"][:h])              # max-pool half
    wlin = wlin.at[h_pad:h_pad + h, :labels].set(params["wlin"][h:]) # mean-pool half
    blin = jnp.zeros((1, OUT_PAD), jnp.float32).at[:, :labels].set(params["blin"])

    packed = {
        "wc1": fuse(params["w1r"], params["w1n"], f_pad), "b1": pad_bias(params["b1"]),
        "wc2": fuse(params["w2r"], params["w2n"], h_pad), "b2": pad_bias(params["b2"]),
        "wc3": fuse(params["w3r"], params["w3n"], h_pad), "b3": pad_bias(params["b3"]),
        "wlin": wlin, "blin": blin,
    }
    return packed, f_pad


def _vmem_spec(shape, index_map):
    return pl.BlockSpec(shape, index_map, memory_space=pltpu.MemorySpace.VMEM)


def _resident_spec(arr):
    """Constant index_map -> the operand stays VMEM-resident across grid steps."""
    nd = arr.ndim
    return pl.BlockSpec(arr.shape, lambda *_: (0,) * nd,
                        memory_space=pltpu.MemorySpace.VMEM)


@jax.jit
def graph_gnn_forward_batched(x, edge_index, params):
    """x: (G, N, F) f32; edge_index: (G, 2, E) int32. Returns (G, labels)."""
    g, n, f = x.shape
    labels = params["blin"].shape[-1]

    gb = _pick_gb(g, n, target_rows=128)   # 128 rows/step: one MXU pass on v5e
    gp = g // gb                           # grid steps (>= 2 in the demo -> both v7x TCs)
    r = gb * n

    packed, f_pad = pack_params(params)

    # Per-graph dense adjacency -> per-step block-diagonal adjacency (bf16).
    adj = jax.vmap(_build_adj, in_axes=(0, None))(edge_index, n)      # (G, N, N)
    adj = adj.reshape(gp, gb, n, n)
    eye = jnp.eye(gb, dtype=adj.dtype)
    adj_bd = (jnp.einsum("ab,paij->paibj", eye, adj)
              .reshape(gp * r, r).astype(jnp.bfloat16))               # (GP*R, R)

    # Node features packed per step and lane-padded.
    x_p = (jnp.zeros((g, n, f_pad), jnp.float32).at[:, :, :f].set(x)
           .reshape(gp * r, f_pad))                                   # (GP*R, F_PAD)

    in_specs = [
        _vmem_spec((r, r), lambda i: (i, 0)),        # block-diag adjacency, per step
        _vmem_spec((r, f_pad), lambda i: (i, 0)),    # packed node features, per step
        _resident_spec(packed["wc1"]), _resident_spec(packed["b1"]),
        _resident_spec(packed["wc2"]), _resident_spec(packed["b2"]),
        _resident_spec(packed["wc3"]), _resident_spec(packed["b3"]),
        _resident_spec(packed["wlin"]), _resident_spec(packed["blin"]),
    ]
    out_specs = _vmem_spec((gb, OUT_PAD), lambda i: (i, 0))

    out = pl.pallas_call(
        gnn_kernel,
        out_shape=jax.ShapeDtypeStruct((g, OUT_PAD), jnp.float32),
        grid=(gp,),
        in_specs=in_specs,
        out_specs=out_specs,
        compiler_params=pltpu.CompilerParams(
            dimension_semantics=("parallel",),       # shard packed steps across TCs
            vmem_limit_bytes=32 * 1024 * 1024),
    )(adj_bd, x_p,
      packed["wc1"], packed["b1"],
      packed["wc2"], packed["b2"],
      packed["wc3"], packed["b3"],
      packed["wlin"], packed["blin"])

    return out[:, :labels]


def graph_gnn_forward(x, edge_index, params):
    """Single-graph forward (original module semantics): x (N,F), edge_index (2,E)."""
    return graph_gnn_forward_batched(x[None], edge_index[None], params)  # (1, labels)


# ----------------------------------------------------------------------------
# Params / reference
# ----------------------------------------------------------------------------
def make_params(key, features=10, hidden=20, labels=2):
    ks = jax.random.split(key, 10)
    scale = 0.1
    return {
        "w1r": scale * jax.random.normal(ks[0], (features, hidden), jnp.float32),
        "w1n": scale * jax.random.normal(ks[1], (features, hidden), jnp.float32),
        "b1": scale * jax.random.normal(ks[2], (1, hidden), jnp.float32),
        "w2r": scale * jax.random.normal(ks[3], (hidden, hidden), jnp.float32),
        "w2n": scale * jax.random.normal(ks[4], (hidden, hidden), jnp.float32),
        "b2": scale * jax.random.normal(ks[5], (1, hidden), jnp.float32),
        "w3r": scale * jax.random.normal(ks[6], (hidden, hidden), jnp.float32),
        "w3n": scale * jax.random.normal(ks[7], (hidden, hidden), jnp.float32),
        "b3": scale * jax.random.normal(ks[8], (1, hidden), jnp.float32),
        # Linear(2*hidden -> labels), stored as [in, out].
        "wlin": scale * jax.random.normal(ks[9], (2 * hidden, labels), jnp.float32),
        "blin": jnp.zeros((1, labels), jnp.float32) + 0.01,
    }


def reference_forward(x, edge_index, params):
    """Pure-JAX reference with identical semantics (single graph)."""
    n = x.shape[0]
    src, dst = edge_index[0], edge_index[1]
    adj = jnp.zeros((n, n), jnp.float32).at[dst, src].add(1.0)

    def conv(h, wr, wn, b):
        return h @ wr + (adj @ h) @ wn + b

    h = jax.nn.relu(conv(x, params["w1r"], params["w1n"], params["b1"]))
    h = jax.nn.relu(conv(h, params["w2r"], params["w2n"], params["b2"]))
    h = jax.nn.relu(conv(h, params["w3r"], params["w3n"], params["b3"]))
    max_p = jnp.max(h, axis=0, keepdims=True)
    mean_p = jnp.mean(h, axis=0, keepdims=True)
    return jnp.concatenate([max_p, mean_p], -1) @ params["wlin"] + params["blin"]


# ----------------------------------------------------------------------------
# Demo / self-test
# ----------------------------------------------------------------------------
if __name__ == "__main__":
    key = jax.random.PRNGKey(0)
    k_x, k_p = jax.random.split(key)

    G, N, FEATURES, HIDDEN, LABELS = 16, 16, 10, 20, 2   # 8 graphs/step, 2 grid steps

    # Deterministic node features for G graphs.
    x = jax.random.normal(k_x, (G, N, FEATURES), jnp.float32)

    # Deterministic small graphs: bidirectional ring + a per-graph chord.
    base = jnp.arange(N, dtype=jnp.int32)
    edges = []
    for g in range(G):
        src = jnp.concatenate([base, (base + 1) % N, base])
        dst = jnp.concatenate([(base + 1) % N, base, (base + 2 + (g % (N - 3))) % N])
        edges.append(jnp.stack([src, dst], axis=0).astype(jnp.int32))
    edge_index = jnp.stack(edges, axis=0)   # (G, 2, 3N)

    params = make_params(k_p, FEATURES, HIDDEN, LABELS)

    # Batched (graph-packed) kernel path.
    out = graph_gnn_forward_batched(x, edge_index, params)
    out = jax.block_until_ready(out)
    assert out.shape == (G, LABELS)

    ref = jax.vmap(lambda xi, ei: reference_forward(xi, ei, params)[0])(x, edge_index)
    assert jnp.allclose(out, ref, atol=1e-5, rtol=1e-5), (out, ref)

    # Single-graph path (original module signature).
    out1 = graph_gnn_forward(x[0], edge_index[0], params)
    out1 = jax.block_until_ready(out1)
    ref1 = reference_forward(x[0], edge_index[0], params)
    assert out1.shape == (1, LABELS)
    assert jnp.allclose(out1, ref1, atol=1e-5, rtol=1e-5), (out1, ref1)

    print("KERNEL_OK")
</pallas_src>

<mosaic_0001>
module attributes {stable_mosaic.version = 11 : i64} {
  func.func private @main(%arg0: i32) attributes {dimension_semantics = [#tpu.dimension_semantics<core_parallel>], iteration_bounds = array<i64: 2>, tpu.core_type = #tpu.core_type<sc_scalar_subcore>, window_params = []} {
    return
  }
}

module attributes {stable_mosaic.version = 11 : i64} {
  func.func private @main(%arg0: i32) attributes {dimension_semantics = [#tpu.dimension_semantics<core_parallel>], iteration_bounds = array<i64: 2>, tpu.core_type = #tpu.core_type<sc_scalar_subcore>, window_params = []} {
    return
  }
}

module attributes {stable_mosaic.version = 11 : i64} {
  func.func @gnn_kernel(%arg0: i32, %arg1: memref<128x128xbf16, #tpu.memory_space<vmem>>, %arg2: memref<128x128xf32, #tpu.memory_space<vmem>>, %arg3: memref<128x256xf32, #tpu.memory_space<vmem>>, %arg4: memref<1x128xf32, #tpu.memory_space<vmem>>, %arg5: memref<128x256xf32, #tpu.memory_space<vmem>>, %arg6: memref<1x128xf32, #tpu.memory_space<vmem>>, %arg7: memref<128x256xf32, #tpu.memory_space<vmem>>, %arg8: memref<1x128xf32, #tpu.memory_space<vmem>>, %arg9: memref<256x128xf32, #tpu.memory_space<vmem>>, %arg10: memref<1x128xf32, #tpu.memory_space<vmem>>, %arg11: memref<8x128xf32, #tpu.memory_space<vmem>>) attributes {dimension_semantics = [#tpu.dimension_semantics<parallel>], iteration_bounds = array<i64: 2>, scalar_prefetch = 0 : i64, scratch_operands = 0 : i64, tpu.core_type = #tpu.core_type<tc>, window_params = [{transform_indices = @transform_0, window_bounds = array<i64: 128, 128>}, {transform_indices = @transform_1, window_bounds = array<i64: 128, 128>}, {pipeline_mode = #tpu.pipeline_mode<synchronous>, transform_indices = @transform_2, window_bounds = array<i64: 128, 256>}, {pipeline_mode = #tpu.pipeline_mode<synchronous>, transform_indices = @transform_3, window_bounds = array<i64: 1, 128>}, {pipeline_mode = #tpu.pipeline_mode<synchronous>, transform_indices = @transform_4, window_bounds = array<i64: 128, 256>}, {pipeline_mode = #tpu.pipeline_mode<synchronous>, transform_indices = @transform_5, window_bounds = array<i64: 1, 128>}, {pipeline_mode = #tpu.pipeline_mode<synchronous>, transform_indices = @transform_6, window_bounds = array<i64: 128, 256>}, {pipeline_mode = #tpu.pipeline_mode<synchronous>, transform_indices = @transform_7, window_bounds = array<i64: 1, 128>}, {pipeline_mode = #tpu.pipeline_mode<synchronous>, transform_indices = @transform_8, window_bounds = array<i64: 256, 128>}, {pipeline_mode = #tpu.pipeline_mode<synchronous>, transform_indices = @transform_9, window_bounds = array<i64: 1, 128>}, {transform_indices = @transform_10, window_bounds = array<i64: 8, 128>}]} {
    %c0 = arith.constant 0 : index
    %c0_0 = arith.constant 0 : index
    %0 = vector.load %arg1[%c0, %c0_0] : memref<128x128xbf16, #tpu.memory_space<vmem>>, vector<128x128xbf16>
    %1 = arith.extf %0 : vector<128x128xbf16> to vector<128x128xf32>
    %c0_1 = arith.constant 0 : index
    %c0_2 = arith.constant 0 : index
    %2 = vector.load %arg2[%c0_1, %c0_2] : memref<128x128xf32, #tpu.memory_space<vmem>>, vector<128x128xf32>
    %c0_3 = arith.constant 0 : index
    %c0_4 = arith.constant 0 : index
    %3 = vector.load %arg3[%c0_3, %c0_4] : memref<128x256xf32, #tpu.memory_space<vmem>>, vector<128x256xf32>
    %c0_5 = arith.constant 0 : index
    %c0_6 = arith.constant 0 : index
    %4 = vector.load %arg4[%c0_5, %c0_6] : memref<1x128xf32, #tpu.memory_space<vmem>>, vector<1x128xf32>
    %cst = arith.constant dense<0.000000e+00> : vector<128x256xf32>
    %5 = tpu.matmul %2, %3, %cst {dimension_numbers = #tpu.dot_dimension_numbers<[1], [0], [0], [1], [0, 0, 1, 1], [], []>} : vector<128x128xf32>, vector<128x256xf32>, vector<128x256xf32> -> vector<128x256xf32>
    %6 = vector.extract_strided_slice %5 {offsets = [0, 128], sizes = [128, 128], strides = [1, 1]} : vector<128x256xf32> to vector<128x128xf32>
    %cst_7 = arith.constant dense<0.000000e+00> : vector<128x128xf32>
    %7 = tpu.matmul %1, %6, %cst_7 {dimension_numbers = #tpu.dot_dimension_numbers<[1], [0], [0], [1], [0, 0, 1, 1], [], []>} : vector<128x128xf32>, vector<128x128xf32>, vector<128x128xf32> -> vector<128x128xf32>
    %8 = vector.extract_strided_slice %5 {offsets = [0, 0], sizes = [128, 128], strides = [1, 1]} : vector<128x256xf32> to vector<128x128xf32>
    %9 = arith.addf %8, %7 : vector<128x128xf32>
    %10 = vector.broadcast %4 : vector<1x128xf32> to vector<128x128xf32>
    %11 = arith.addf %9, %10 : vector<128x128xf32>
    %cst_8 = arith.constant 0.000000e+00 : f32
    %12 = vector.broadcast %cst_8 : f32 to vector<128x128xf32>
    %13 = arith.maximumf %11, %12 : vector<128x128xf32>
    %c0_9 = arith.constant 0 : index
    %c0_10 = arith.constant 0 : index
    %14 = vector.load %arg5[%c0_9, %c0_10] : memref<128x256xf32, #tpu.memory_space<vmem>>, vector<128x256xf32>
    %c0_11 = arith.constant 0 : index
    %c0_12 = arith.constant 0 : index
    %15 = vector.load %arg6[%c0_11, %c0_12] : memref<1x128xf32, #tpu.memory_space<vmem>>, vector<1x128xf32>
    %cst_13 = arith.constant dense<0.000000e+00> : vector<128x256xf32>
    %16 = tpu.matmul %13, %14, %cst_13 {dimension_numbers = #tpu.dot_dimension_numbers<[1], [0], [0], [1], [0, 0, 1, 1], [], []>} : vector<128x128xf32>, vector<128x256xf32>, vector<128x256xf32> -> vector<128x256xf32>
    %17 = vector.extract_strided_slice %16 {offsets = [0, 128], sizes = [128, 128], strides = [1, 1]} : vector<128x256xf32> to vector<128x128xf32>
    %cst_14 = arith.constant dense<0.000000e+00> : vector<128x128xf32>
    %18 = tpu.matmul %1, %17, %cst_14 {dimension_numbers = #tpu.dot_dimension_numbers<[1], [0], [0], [1], [0, 0, 1, 1], [], []>} : vector<128x128xf32>, vector<128x128xf32>, vector<128x128xf32> -> vector<128x128xf32>
    %19 = vector.extract_strided_slice %16 {offsets = [0, 0], sizes = [128, 128], strides = [1, 1]} : vector<128x256xf32> to vector<128x128xf32>
    %20 = arith.addf %19, %18 : vector<128x128xf32>
    %21 = vector.broadcast %15 : vector<1x128xf32> to vector<128x128xf32>
    %22 = arith.addf %20, %21 : vector<128x128xf32>
    %cst_15 = arith.constant 0.000000e+00 : f32
    %23 = vector.broadcast %cst_15 : f32 to vector<128x128xf32>
    %24 = arith.maximumf %22, %23 : vector<128x128xf32>
    %c0_16 = arith.constant 0 : index
    %c0_17 = arith.constant 0 : index
    %25 = vector.load %arg7[%c0_16, %c0_17] : memref<128x256xf32, #tpu.memory_space<vmem>>, vector<128x256xf32>
    %c0_18 = arith.constant 0 : index
    %c0_19 = arith.constant 0 : index
    %26 = vector.load %arg8[%c0_18, %c0_19] : memref<1x128xf32, #tpu.memory_space<vmem>>, vector<1x128xf32>
    %cst_20 = arith.constant dense<0.000000e+00> : vector<128x256xf32>
    %27 = tpu.matmul %24, %25, %cst_20 {dimension_numbers = #tpu.dot_dimension_numbers<[1], [0], [0], [1], [0, 0, 1, 1], [], []>} : vector<128x128xf32>, vector<128x256xf32>, vector<128x256xf32> -> vector<128x256xf32>
    %28 = vector.extract_strided_slice %27 {offsets = [0, 128], sizes = [128, 128], strides = [1, 1]} : vector<128x256xf32> to vector<128x128xf32>
    %cst_21 = arith.constant dense<0.000000e+00> : vector<128x128xf32>
    %29 = tpu.matmul %1, %28, %cst_21 {dimension_numbers = #tpu.dot_dimension_numbers<[1], [0], [0], [1], [0, 0, 1, 1], [], []>} : vector<128x128xf32>, vector<128x128xf32>, vector<128x128xf32> -> vector<128x128xf32>
    %30 = vector.extract_strided_slice %27 {offsets = [0, 0], sizes = [128, 128], strides = [1, 1]} : vector<128x256xf32> to vector<128x128xf32>
    %31 = arith.addf %30, %29 : vector<128x128xf32>
    %32 = vector.broadcast %26 : vector<1x128xf32> to vector<128x128xf32>
    %33 = arith.addf %31, %32 : vector<128x128xf32>
    %cst_22 = arith.constant 0.000000e+00 : f32
    %34 = vector.broadcast %cst_22 : f32 to vector<128x128xf32>
    %35 = arith.maximumf %33, %34 : vector<128x128xf32>
    %36 = vector.shape_cast %35 : vector<128x128xf32> to vector<8x16x128xf32>
    %cst_23 = arith.constant dense<0xFF800000> : vector<8x128xf32>
    %37 = vector.multi_reduction <maximumf>, %36, %cst_23 [1] : vector<8x16x128xf32> to vector<8x128xf32>
    %cst_24 = arith.constant dense<0.000000e+00> : vector<8x128xf32>
    %38 = vector.multi_reduction <add>, %36, %cst_24 [1] : vector<8x16x128xf32> to vector<8x128xf32>
    %cst_25 = arith.constant 6.250000e-02 : f32
    %39 = vector.broadcast %cst_25 : f32 to vector<8x128xf32>
    %40 = arith.mulf %38, %39 : vector<8x128xf32>
    %41 = tpu.concatenate %37, %40 in 1 : vector<8x128xf32>, vector<8x128xf32> -> vector<8x256xf32>
    %c0_26 = arith.constant 0 : index
    %c0_27 = arith.constant 0 : index
    %42 = vector.load %arg9[%c0_26, %c0_27] : memref<256x128xf32, #tpu.memory_space<vmem>>, vector<256x128xf32>
    %cst_28 = arith.constant dense<0.000000e+00> : vector<8x128xf32>
    %43 = tpu.matmul %41, %42, %cst_28 {dimension_numbers = #tpu.dot_dimension_numbers<[1], [0], [0], [1], [0, 0, 1, 1], [], []>} : vector<8x256xf32>, vector<256x128xf32>, vector<8x128xf32> -> vector<8x128xf32>
    %c0_29 = arith.constant 0 : index
    %c0_30 = arith.constant 0 : index
    %44 = vector.load %arg10[%c0_29, %c0_30] : memref<1x128xf32, #tpu.memory_space<vmem>>, vector<1x128xf32>
    %45 = vector.broadcast %44 : vector<1x128xf32> to vector<8x128xf32>
    %46 = arith.addf %43, %45 : vector<8x128xf32>
    %c0_31 = arith.constant 0 : index
    %c0_32 = arith.constant 0 : index
    %47 = vector.load %arg11[%c0_31, %c0_32] : memref<8x128xf32, #tpu.memory_space<vmem>>, vector<8x128xf32>
    tpu.vector_store %arg11[%c0_31, %c0_32], %46 {strides = array<i32>} : memref<8x128xf32, #tpu.memory_space<vmem>>, vector<8x128xf32>,
    return
  }
  func.func @transform_0(%arg0: i32) -> (i32, i32) {
    %c0_i32 = arith.constant 0 : i32
    %c0_i32_0 = arith.constant 0 : i32
    return %arg0, %c0_i32 : i32, i32
  }
  func.func @transform_1(%arg0: i32) -> (i32, i32) {
    %c0_i32 = arith.constant 0 : i32
    %c0_i32_0 = arith.constant 0 : i32
    return %arg0, %c0_i32 : i32, i32
  }
  func.func @transform_2(%arg0: i32) -> (i32, i32) {
    %c0_i32 = arith.constant 0 : i32
    %c0_i32_0 = arith.constant 0 : i32
    %c0_i32_1 = arith.constant 0 : i32
    return %c0_i32, %c0_i32_0 : i32, i32
  }
  func.func @transform_3(%arg0: i32) -> (i32, i32) {
    %c0_i32 = arith.constant 0 : i32
    %c0_i32_0 = arith.constant 0 : i32
    %c0_i32_1 = arith.constant 0 : i32
    return %c0_i32, %c0_i32_0 : i32, i32
  }
  func.func @transform_4(%arg0: i32) -> (i32, i32) {
    %c0_i32 = arith.constant 0 : i32
    %c0_i32_0 = arith.constant 0 : i32
    %c0_i32_1 = arith.constant 0 : i32
    return %c0_i32, %c0_i32_0 : i32, i32
  }
  func.func @transform_5(%arg0: i32) -> (i32, i32) {
    %c0_i32 = arith.constant 0 : i32
    %c0_i32_0 = arith.constant 0 : i32
    %c0_i32_1 = arith.constant 0 : i32
    return %c0_i32, %c0_i32_0 : i32, i32
  }
  func.func @transform_6(%arg0: i32) -> (i32, i32) {
    %c0_i32 = arith.constant 0 : i32
    %c0_i32_0 = arith.constant 0 : i32
    %c0_i32_1 = arith.constant 0 : i32
    return %c0_i32, %c0_i32_0 : i32, i32
  }
  func.func @transform_7(%arg0: i32) -> (i32, i32) {
    %c0_i32 = arith.constant 0 : i32
    %c0_i32_0 = arith.constant 0 : i32
    %c0_i32_1 = arith.constant 0 : i32
    return %c0_i32, %c0_i32_0 : i32, i32
  }
  func.func @transform_8(%arg0: i32) -> (i32, i32) {
    %c0_i32 = arith.constant 0 : i32
    %c0_i32_0 = arith.constant 0 : i32
    %c0_i32_1 = arith.constant 0 : i32
    return %c0_i32, %c0_i32_0 : i32, i32
  }
  func.func @transform_9(%arg0: i32) -> (i32, i32) {
    %c0_i32 = arith.constant 0 : i32
    %c0_i32_0 = arith.constant 0 : i32
    %c0_i32_1 = arith.constant 0 : i32
    return %c0_i32, %c0_i32_0 : i32, i32
  }
  func.func @transform_10(%arg0: i32) -> (i32, i32) {
    %c0_i32 = arith.constant 0 : i32
    %c0_i32_0 = arith.constant 0 : i32
    return %arg0, %c0_i32 : i32, i32
  }
}

</mosaic_0001>

<llo_original>
// kernel: graph_gnn_forward_batched.1
$region0: #{graph_gnn_forward_batched.1}
  #allocation0 [shape = 'u32[]', space=smem, size = 0x4, offset = 0x4, fixed_abs, tag = 'smem constant byte address 0x4 - core index']
  #allocation1 [shape = 'u32[144,128]{1,0:T(1,128)}', space=vmem, size = 0x12000, scoped, tag = 'internal scratch']
  %s0 = inlined_call_operand.vmem [shape: bf16[256,128], index: 0, kind: input, shape index: {}]
  %s1 = inlined_call_operand.vmem [shape: f32[256,128], index: 1, kind: input, shape index: {}]
  %s2 = inlined_call_operand.vmem [shape: f32[128,256], index: 2, kind: input, shape index: {}]
  %s3 = inlined_call_operand.vmem [shape: f32[1,128], index: 3, kind: input, shape index: {}]
  %s4 = inlined_call_operand.vmem [shape: f32[128,256], index: 4, kind: input, shape index: {}]
  %s5 = inlined_call_operand.vmem [shape: f32[1,128], index: 5, kind: input, shape index: {}]
  %s6 = inlined_call_operand.vmem [shape: f32[128,256], index: 6, kind: input, shape index: {}]
  %s7 = inlined_call_operand.vmem [shape: f32[1,128], index: 7, kind: input, shape index: {}]
  %s8 = inlined_call_operand.vmem [shape: f32[256,128], index: 8, kind: input, shape index: {}]
  %s9 = inlined_call_operand.vmem [shape: f32[1,128], index: 9, kind: input, shape index: {}]
  %s10 = inlined_call_operand.vmem [shape: f32[16,128], index: 10, kind: output, shape index: {}]
  %s11 = sld [smem:[#allocation0]]
  $region73: #{graph_gnn_forward_batched.1} parent=0
    _
  %s13 = ssub.s32 1, %s11
  %s14 = scalar_select 0, %s13, %s11
  loop: start=0, step=1, limit=4
  $region2: #{graph_gnn_forward_batched.1} parent=0 // loop_pre_header
    _
  $region3: #{graph_gnn_forward_batched.1} parent=0 // loop_header
    %s16 = sphi 0, %s20
    %p17 = scmp.ge.s32.totalorder %s16, 4
    %s26 = sphi 0, %s28
    %s29 = sphi 0, %s26
    %s30 = sphi 0, %s29
    %s46 = sphi 0, %s30
    %s52 = sphi 0, %s54
    %s55 = sphi 0, %s52
    %s56 = sphi 0, %s55
    %s72 = sphi 0, %s56
    %s76 = sphi 0, %s76
    %s78 = sphi 0, %s76
    %s79 = sphi 0, %s78
    %s93 = sphi 0, %s79
    %s97 = sphi 0, %s97
    %s99 = sphi 0, %s97
    %s100 = sphi 0, %s99
    %s114 = sphi 0, %s100
    %s118 = sphi 0, %s118
    %s120 = sphi 0, %s118
    %s121 = sphi 0, %s120
    %s135 = sphi 0, %s121
    %s139 = sphi 0, %s139
    %s141 = sphi 0, %s139
    %s142 = sphi 0, %s141
    %s156 = sphi 0, %s142
    %s160 = sphi 0, %s160
    %s162 = sphi 0, %s160
    %s163 = sphi 0, %s162
    %s177 = sphi 0, %s163
    %s181 = sphi 0, %s181
    %s183 = sphi 0, %s181
    %s184 = sphi 0, %s183
    %s198 = sphi 0, %s184
    %s202 = sphi 0, %s202
    %s204 = sphi 0, %s202
    %s205 = sphi 0, %s204
    %s219 = sphi 0, %s205
    %s223 = sphi 0, %s223
    %s225 = sphi 0, %s223
    %s226 = sphi 0, %s225
    %s240 = sphi 0, %s226
    %s246 = sphi 0, %s248
    %s249 = sphi 0, %s246
    %s250 = sphi 0, %s249
    %s266 = sphi 0, %s250
  $region4: #{graph_gnn_forward_batched.1} parent=0 // loop_header_branch
    %19 = sbr.rel (%p17) target = $region8
  $region5: #{graph_gnn_forward_batched.1} parent=0 // loop_body
    %s21 = ssub.s32 %s16, 1
    %s22 = ssub.s32 %s16, 2
    %s23 = sadd.s32 %s16, 1
    %s24 = ssub.s32 %s16, %s23
    %p25 = scmp.eq.s32.totalorder %s24, 0
    %s27 = sadd.s32 %s26, 1
    %s28 = scalar_select %p25, %s26, %s27
    %p31 = pneg %p25
    %p32 = scmp.eq.s32.totalorder %s16, 1
    %p33 = por %p31, %p32
    %p34 = scmp.ne.s32.totalorder %s26, %s29
    %p35 = scmp.eq.s32.totalorder %s16, 0
    %p36 = por %p34, %p35
    %p37 = scmp.ne.s32.totalorder %s26, %s29
    %p38 = scmp.eq.s32.totalorder %s21, 1
    %p39 = por %p37, %p38
    %p40 = scmp.ne.s32.totalorder %s29, %s30
    %p41 = scmp.eq.s32.totalorder %s21, 0
    %p42 = por %p40, %p41
    %p43 = scmp.ne.s32.totalorder %s29, %s30
    %p44 = scmp.eq.s32.totalorder %s22, 1
    %p45 = por %p43, %p44
    %p47 = scmp.ne.s32.totalorder %s30, %s46
    %p48 = scmp.eq.s32.totalorder %s22, 0
    %p49 = por %p47, %p48
    %s50 = ssub.s32 %s16, %s23
    %p51 = scmp.eq.s32.totalorder %s50, 0
    %s53 = sadd.s32 %s52, 1
    %s54 = scalar_select %p51, %s52, %s53
    %p57 = pneg %p51
    %p58 = scmp.eq.s32.totalorder %s16, 1
    %p59 = por %p57, %p58
    %p60 = scmp.ne.s32.totalorder %s52, %s55
    %p61 = scmp.eq.s32.totalorder %s16, 0
    %p62 = por %p60, %p61
    %p63 = scmp.ne.s32.totalorder %s52, %s55
    %p64 = scmp.eq.s32.totalorder %s21, 1
    %p65 = por %p63, %p64
    %p66 = scmp.ne.s32.totalorder %s55, %s56
    %p67 = scmp.eq.s32.totalorder %s21, 0
    %p68 = por %p66, %p67
    %p69 = scmp.ne.s32.totalorder %s55, %s56
    %p70 = scmp.eq.s32.totalorder %s22, 1
    %p71 = por %p69, %p70
    %p73 = scmp.ne.s32.totalorder %s56, %s72
    %p74 = scmp.eq.s32.totalorder %s22, 0
    %p75 = por %p73, %p74
    %s77 = sadd.s32 %s76, 1
    %p80 = scmp.eq.s32.totalorder %s16, 1
    %p81 = scmp.ne.s32.totalorder %s76, %s78
    %p82 = scmp.eq.s32.totalorder %s16, 0
    %p83 = por %p81, %p82
    %p84 = scmp.ne.s32.totalorder %s76, %s78
    %p85 = scmp.eq.s32.totalorder %s21, 1
    %p86 = por %p84, %p85
    %p87 = scmp.ne.s32.totalorder %s78, %s79
    %p88 = scmp.eq.s32.totalorder %s21, 0
    %p89 = por %p87, %p88
    %p90 = scmp.ne.s32.totalorder %s78, %s79
    %p91 = scmp.eq.s32.totalorder %s22, 1
    %p92 = por %p90, %p91
    %p94 = scmp.ne.s32.totalorder %s79, %s93
    %p95 = scmp.eq.s32.totalorder %s22, 0
    %p96 = por %p94, %p95
    %s98 = sadd.s32 %s97, 1
    %p101 = scmp.eq.s32.totalorder %s16, 1
    %p102 = scmp.ne.s32.totalorder %s97, %s99
    %p103 = scmp.eq.s32.totalorder %s16, 0
    %p104 = por %p102, %p103
    %p105 = scmp.ne.s32.totalorder %s97, %s99
    %p106 = scmp.eq.s32.totalorder %s21, 1
    %p107 = por %p105, %p106
    %p108 = scmp.ne.s32.totalorder %s99, %s100
    %p109 = scmp.eq.s32.totalorder %s21, 0
    %p110 = por %p108, %p109
    %p111 = scmp.ne.s32.totalorder %s99, %s100
    %p112 = scmp.eq.s32.totalorder %s22, 1
    %p113 = por %p111, %p112
    %p115 = scmp.ne.s32.totalorder %s100, %s114
    %p116 = scmp.eq.s32.totalorder %s22, 0
    %p117 = por %p115, %p116
    %s119 = sadd.s32 %s118, 1
    %p122 = scmp.eq.s32.totalorder %s16, 1
    %p123 = scmp.ne.s32.totalorder %s118, %s120
    %p124 = scmp.eq.s32.totalorder %s16, 0
    %p125 = por %p123, %p124
    %p126 = scmp.ne.s32.totalorder %s118, %s120
    %p127 = scmp.eq.s32.totalorder %s21, 1
    %p128 = por %p126, %p127
    %p129 = scmp.ne.s32.totalorder %s120, %s121
    %p130 = scmp.eq.s32.totalorder %s21, 0
    %p131 = por %p129, %p130
    %p132 = scmp.ne.s32.totalorder %s120, %s121
    %p133 = scmp.eq.s32.totalorder %s22, 1
    %p134 = por %p132, %p133
    %p136 = scmp.ne.s32.totalorder %s121, %s135
    %p137 = scmp.eq.s32.totalorder %s22, 0
    %p138 = por %p136, %p137
    %s140 = sadd.s32 %s139, 1
    %p143 = scmp.eq.s32.totalorder %s16, 1
    %p144 = scmp.ne.s32.totalorder %s139, %s141
    %p145 = scmp.eq.s32.totalorder %s16, 0
    %p146 = por %p144, %p145
    %p147 = scmp.ne.s32.totalorder %s139, %s141
    %p148 = scmp.eq.s32.totalorder %s21, 1
    %p149 = por %p147, %p148
    %p150 = scmp.ne.s32.totalorder %s141, %s142
    %p151 = scmp.eq.s32.totalorder %s21, 0
    %p152 = por %p150, %p151
    %p153 = scmp.ne.s32.totalorder %s141, %s142
    %p154 = scmp.eq.s32.totalorder %s22, 1
    %p155 = por %p153, %p154
    %p157 = scmp.ne.s32.totalorder %s142, %s156
    %p158 = scmp.eq.s32.totalorder %s22, 0
    %p159 = por %p157, %p158
    %s161 = sadd.s32 %s160, 1
    %p164 = scmp.eq.s32.totalorder %s16, 1
    %p165 = scmp.ne.s32.totalorder %s160, %s162
    %p166 = scmp.eq.s32.totalorder %s16, 0
    %p167 = por %p165, %p166
    %p168 = scmp.ne.s32.totalorder %s160, %s162
    %p169 = scmp.eq.s32.totalorder %s21, 1
    %p170 = por %p168, %p169
    %p171 = scmp.ne.s32.totalorder %s162, %s163
    %p172 = scmp.eq.s32.totalorder %s21, 0
    %p173 = por %p171, %p172
    %p174 = scmp.ne.s32.totalorder %s162, %s163
    %p175 = scmp.eq.s32.totalorder %s22, 1
    %p176 = por %p174, %p175
    %p178 = scmp.ne.s32.totalorder %s163, %s177
    %p179 = scmp.eq.s32.totalorder %s22, 0
    %p180 = por %p178, %p179
    %s182 = sadd.s32 %s181, 1
    %p185 = scmp.eq.s32.totalorder %s16, 1
    %p186 = scmp.ne.s32.totalorder %s181, %s183
    %p187 = scmp.eq.s32.totalorder %s16, 0
    %p188 = por %p186, %p187
    %p189 = scmp.ne.s32.totalorder %s181, %s183
    %p190 = scmp.eq.s32.totalorder %s21, 1
    %p191 = por %p189, %p190
    %p192 = scmp.ne.s32.totalorder %s183, %s184
    %p193 = scmp.eq.s32.totalorder %s21, 0
    %p194 = por %p192, %p193
    %p195 = scmp.ne.s32.totalorder %s183, %s184
    %p196 = scmp.eq.s32.totalorder %s22, 1
    %p197 = por %p195, %p196
    %p199 = scmp.ne.s32.totalorder %s184, %s198
    %p200 = scmp.eq.s32.totalorder %s22, 0
    %p201 = por %p199, %p200
    %s203 = sadd.s32 %s202, 1
    %p206 = scmp.eq.s32.totalorder %s16, 1
    %p207 = scmp.ne.s32.totalorder %s202, %s204
    %p208 = scmp.eq.s32.totalorder %s16, 0
    %p209 = por %p207, %p208
    %p210 = scmp.ne.s32.totalorder %s202, %s204
    %p211 = scmp.eq.s32.totalorder %s21, 1
    %p212 = por %p210, %p211
    %p213 = scmp.ne.s32.totalorder %s204, %s205
    %p214 = scmp.eq.s32.totalorder %s21, 0
    %p215 = por %p213, %p214
    %p216 = scmp.ne.s32.totalorder %s204, %s205
    %p217 = scmp.eq.s32.totalorder %s22, 1
    %p218 = por %p216, %p217
    %p220 = scmp.ne.s32.totalorder %s205, %s219
    %p221 = scmp.eq.s32.totalorder %s22, 0
    %p222 = por %p220, %p221
    %s224 = sadd.s32 %s223, 1
    %p227 = scmp.eq.s32.totalorder %s16, 1
    %p228 = scmp.ne.s32.totalorder %s223, %s225
    %p229 = scmp.eq.s32.totalorder %s16, 0
    %p230 = por %p228, %p229
    %p231 = scmp.ne.s32.totalorder %s223, %s225
    %p232 = scmp.eq.s32.totalorder %s21, 1
    %p233 = por %p231, %p232
    %p234 = scmp.ne.s32.totalorder %s225, %s226
    %p235 = scmp.eq.s32.totalorder %s21, 0
    %p236 = por %p234, %p235
    %p237 = scmp.ne.s32.totalorder %s225, %s226
    %p238 = scmp.eq.s32.totalorder %s22, 1
    %p239 = por %p237, %p238
    %p241 = scmp.ne.s32.totalorder %s226, %s240
    %p242 = scmp.eq.s32.totalorder %s22, 0
    %p243 = por %p241, %p242
    %s244 = ssub.s32 %s16, %s23
    %p245 = scmp.eq.s32.totalorder %s244, 0
    %s247 = sadd.s32 %s246, 1
    %s248 = scalar_select %p245, %s246, %s247
    %p251 = pneg %p245
    %p252 = scmp.eq.s32.totalorder %s16, 1
    %p253 = por %p251, %p252
    %p254 = scmp.ne.s32.totalorder %s246, %s249
    %p255 = scmp.eq.s32.totalorder %s16, 0
    %p256 = por %p254, %p255
    %p257 = scmp.ne.s32.totalorder %s246, %s249
    %p258 = scmp.eq.s32.totalorder %s21, 1
    %p259 = por %p257, %p258
    %p260 = scmp.ne.s32.totalorder %s249, %s250
    %p261 = scmp.eq.s32.totalorder %s21, 0
    %p262 = por %p260, %p261
    %p263 = scmp.ne.s32.totalorder %s249, %s250
    %p264 = scmp.eq.s32.totalorder %s22, 1
    %p265 = por %p263, %p264
    %p267 = scmp.ne.s32.totalorder %s250, %s266
    %p268 = scmp.eq.s32.totalorder %s22, 0
    %p269 = por %p267, %p268
    %p270 = scmp.le.s32.totalorder 1, %s16
    %p271 = scmp.lt.s32.totalorder %s16, 3
    %p272 = pnand %p270, %p271
    %p273 = pneg %p272
    // Predicated region
    $region9: #{graph_gnn_forward_batched.1} parent=5 // pred_check
      _
    $region10: #{graph_gnn_forward_batched.1} parent=5 // pred_check_branch
      %275 = sbr.rel (%p272) target = $region12
    $region11: #{graph_gnn_forward_batched.1} parent=5 // pred_region
      %s276 = ssub.s32 %s16, 1
      // Predicated region
      $region13: #{graph_gnn_forward_batched.1} parent=11 // pred_check
        %p277 = pneg %p89
      $region14: #{graph_gnn_forward_batched.1} parent=11 // pred_check_branch
        %279 = sbr.rel (%p277) target = $region16
      $region15: #{graph_gnn_forward_batched.1} parent=11 // pred_region
        _
      $region16: #{graph_gnn_forward_batched.1} parent=11 // pred_fallthru
        _
      // Predicated region
      $region17: #{graph_gnn_forward_batched.1} parent=11 // pred_check
        %p280 = pneg %p110
      $region18: #{graph_gnn_forward_batched.1} parent=11 // pred_check_branch
        %282 = sbr.rel (%p280) target = $region20
      $region19: #{graph_gnn_forward_batched.1} parent=11 // pred_region
        _
      $region20: #{graph_gnn_forward_batched.1} parent=11 // pred_fallthru
        _
      // Predicated region
      $region21: #{graph_gnn_forward_batched.1} parent=11 // pred_check
        %p283 = pneg %p131
      $region22: #{graph_gnn_forward_batched.1} parent=11 // pred_check_branch
        %285 = sbr.rel (%p283) target = $region24
      $region23: #{graph_gnn_forward_batched.1} parent=11 // pred_region
        _
      $region24: #{graph_gnn_forward_batched.1} parent=11 // pred_fallthru
        _
      // Predicated region
      $region25: #{graph_gnn_forward_batched.1} parent=11 // pred_check
        %p286 = pneg %p152
      $region26: #{graph_gnn_forward_batched.1} parent=11 // pred_check_branch
        %288 = sbr.rel (%p286) target = $region28
      $region27: #{graph_gnn_forward_batched.1} parent=11 // pred_region
        _
      $region28: #{graph_gnn_forward_batched.1} parent=11 // pred_fallthru
        _
      // Predicated region
      $region29: #{graph_gnn_forward_batched.1} parent=11 // pred_check
        %p289 = pneg %p173
      $region30: #{graph_gnn_forward_batched.1} parent=11 // pred_check_branch
        %291 = sbr.rel (%p289) target = $region32
      $region31: #{graph_gnn_forward_batched.1} parent=11 // pred_region
        _
      $region32: #{graph_gnn_forward_batched.1} parent=11 // pred_fallthru
        _
      // Predicated region
      $region33: #{graph_gnn_forward_batched.1} parent=11 // pred_check
        %p292 = pneg %p194
      $region34: #{graph_gnn_forward_batched.1} parent=11 // pred_check_branch
        %294 = sbr.rel (%p292) target = $region36
      $region35: #{graph_gnn_forward_batched.1} parent=11 // pred_region
        _
      $region36: #{graph_gnn_forward_batched.1} parent=11 // pred_fallthru
        _
      // Predicated region
      $region37: #{graph_gnn_forward_batched.1} parent=11 // pred_check
        %p295 = pneg %p215
      $region38: #{graph_gnn_forward_batched.1} parent=11 // pred_check_branch
        %297 = sbr.rel (%p295) target = $region40
      $region39: #{graph_gnn_forward_batched.1} parent=11 // pred_region
        _
      $region40: #{graph_gnn_forward_batched.1} parent=11 // pred_fallthru
        _
      // Predicated region
      $region41: #{graph_gnn_forward_batched.1} parent=11 // pred_check
        %p298 = pneg %p236
      $region42: #{graph_gnn_forward_batched.1} parent=11 // pred_check_branch
        %300 = sbr.rel (%p298) target = $region44
      $region43: #{graph_gnn_forward_batched.1} parent=11 // pred_region
        _
      $region44: #{graph_gnn_forward_batched.1} parent=11 // pred_fallthru
        _
    $region12: #{graph_gnn_forward_batched.1} parent=5 // pred_fallthru
      _
    %p301 = scmp.lt.s32.totalorder %s16, 2
    // Predicated region
    $region45: #{graph_gnn_forward_batched.1} parent=5 // pred_check
      %p302 = pneg %p301
    $region46: #{graph_gnn_forward_batched.1} parent=5 // pred_check_branch
      %304 = sbr.rel (%p302) target = $region48
    $region47: #{graph_gnn_forward_batched.1} parent=5 // pred_region
      // Predicated region
      $region49: #{graph_gnn_forward_batched.1} parent=47 // pred_check
        %p305 = pneg %p36
      $region50: #{graph_gnn_forward_batched.1} parent=47 // pred_check_branch
        %307 = sbr.rel (%p305) target = $region52
      $region51: #{graph_gnn_forward_batched.1} parent=47 // pred_region
        %s308 = smul.u32 16, %s16
        %p309 = scmp.lt.s32.totalorder %s308, 31
        %s310 = scalar_select %p309, %s308, 31
        %s311 = smul.addr %s310, 4
        %s312 = scalar_lea.vmem %s0, %s311
        %s313 = smul.u32 16, %s16
      $region52: #{graph_gnn_forward_batched.1} parent=47 // pred_fallthru
        _
      // Predicated region
      $region53: #{graph_gnn_forward_batched.1} parent=47 // pred_check
        %p314 = pneg %p62
      $region54: #{graph_gnn_forward_batched.1} parent=47 // pred_check_branch
        %316 = sbr.rel (%p314) target = $region56
      $region55: #{graph_gnn_forward_batched.1} parent=47 // pred_region
        %s317 = smul.u32 16, %s16
        %p318 = scmp.lt.s32.totalorder %s317, 31
        %s319 = scalar_select %p318, %s317, 31
        %s320 = smul.addr %s319, 8
        %s321 = scalar_lea.vmem %s1, %s320
        %s322 = smul.u32 16, %s16
      $region56: #{graph_gnn_forward_batched.1} parent=47 // pred_fallthru
        _
    $region48: #{graph_gnn_forward_batched.1} parent=5 // pred_fallthru
      _
    %p323 = scmp.le.s32.totalorder 1, %s16
    %p324 = scmp.lt.s32.totalorder %s16, 3
    %p325 = pnand %p323, %p324
    %p326 = pneg %p325
    // Predicated region
    $region57: #{graph_gnn_forward_batched.1} parent=5 // pred_check
      _
    $region58: #{graph_gnn_forward_batched.1} parent=5 // pred_check_branch
      %328 = sbr.rel (%p325) target = $region60
    $region59: #{graph_gnn_forward_batched.1} parent=5 // pred_region
      %s329 = ssub.s32 %s16, 1
      %s330 = smul.u32 16, %s21
      %p331 = scmp.lt.s32.totalorder %s330, 31
      %s332 = scalar_select %p331, %s330, 31
      %s333 = smul.addr %s332, 4
      %s334 = scalar_lea.vmem %s0, %s333
      %p335 = pneg %p42
      %p336 = pneg %p39
      %s337 = smul.u32 16, %s21
      %p338 = scmp.lt.s32.totalorder %s337, 31
      %s339 = scalar_select %p338, %s337, 31
      %s340 = smul.addr %s339, 8
      %s341 = scalar_lea.vmem %s1, %s340
      %p342 = pneg %p68
      %p343 = pneg %p65
      %p344 = pneg %p89
      %p345 = pneg %p86
      %p346 = pneg %p110
      %p347 = pneg %p107
      %p348 = pneg %p131
      %p349 = pneg %p128
      %p350 = pneg %p152
      %p351 = pneg %p149
      %p352 = pneg %p173
      %p353 = pneg %p170
      %p354 = pneg %p194
      %p355 = pneg %p191
      %p356 = pneg %p215
      %p357 = pneg %p212
      %p358 = pneg %p236
      %p359 = pneg %p233
      %p360 = pneg %p262
      %p361 = pneg %p259
      %p362 = scmp.lt.s32.totalorder %s21, 1
      %s363 = scalar_select %p362, %s21, 1
      %s364 = smul.addr %s363, 8
      %s365 = scalar_lea.vmem %s10, %s364
      %s366 = smul.u32 16, %s21
      %p367 = scmp.lt.s32.totalorder %s366, 31
      %s368 = scalar_select %p367, %s366, 31
      %s369 = smul.addr %s368, 4
      %s370 = scalar_lea.vmem %s0, %s369
      %s371 = smul.u32 16, %s21
      %s372 = smul.u32 16, %s21
      %p373 = scmp.lt.s32.totalorder %s372, 31
      %s374 = scalar_select %p373, %s372, 31
      %s375 = smul.addr %s374, 8
      %s376 = scalar_lea.vmem %s1, %s375
      %s377 = smul.u32 16, %s21
      %p378 = scmp.lt.s32.totalorder %s21, 1
      %s379 = scalar_select %p378, %s21, 1
      %s380 = smul.addr %s379, 8
      %s381 = scalar_lea.vmem %s10, %s380
      %v382 = vld [vmem:[%s370] sm:$0xf]
      %v383 = vld [vmem:[%s370 + $0x4] sm:$0xf]
      %v384 = vld [vmem:[%s370 + $0x8] sm:$0xf]
      %v385 = vld [vmem:[%s370 + $0xc] sm:$0xf]
      %v386 = vld [vmem:[%s370 + $0x10] sm:$0xf]
      %v387 = vld [vmem:[%s370 + $0x14] sm:$0xf]
      %v388 = vld [vmem:[%s370 + $0x18] sm:$0xf]
      %v389 = vld [vmem:[%s370 + $0x1c] sm:$0xf]
      %v390 = vld [vmem:[%s370 + $0x20] sm:$0xf]
      %v391 = vld [vmem:[%s370 + $0x24] sm:$0xf]
      %v392 = vld [vmem:[%s370 + $0x28] sm:$0xf]
      %v393 = vld [vmem:[%s370 + $0x2c] sm:$0xf]
      %v394 = vld [vmem:[%s370 + $0x30] sm:$0xf]
      %v395 = vld [vmem:[%s370 + $0x34] sm:$0xf]
      %v396 = vld [vmem:[%s370 + $0x38] sm:$0xf]
      %v397 = vld [vmem:[%s370 + $0x3c] sm:$0xf]
      %v398 = vunpack.c.l.bf16 %v382
      %v399 = vunpack.c.l.bf16 %v383
      %v400 = vunpack.c.l.bf16 %v384
      %v401 = vunpack.c.l.bf16 %v385
      %v402 = vunpack.c.l.bf16 %v386
      %v403 = vunpack.c.l.bf16 %v387
      %v404 = vunpack.c.l.bf16 %v388
      %v405 = vunpack.c.l.bf16 %v389
      %v406 = vunpack.c.l.bf16 %v390
      %v407 = vunpack.c.l.bf16 %v391
      %v408 = vunpack.c.l.bf16 %v392
      %v409 = vunpack.c.l.bf16 %v393
      %v410 = vunpack.c.l.bf16 %v394
      %v411 = vunpack.c.l.bf16 %v395
      %v412 = vunpack.c.l.bf16 %v396
      %v413 = vunpack.c.l.bf16 %v397
      %v414 = vld [vmem:[%s376] sm:$0xff]
      %v415 = vld [vmem:[%s376 + $0x8] sm:$0xff]
      %v416 = vld [vmem:[%s376 + $0x10] sm:$0xff]
      %v417 = vld [vmem:[%s376 + $0x18] sm:$0xff]
      %v418 = vld [vmem:[%s376 + $0x20] sm:$0xff]
      %v419 = vld [vmem:[%s376 + $0x28] sm:$0xff]
      %v420 = vld [vmem:[%s376 + $0x30] sm:$0xff]
      %v421 = vld [vmem:[%s376 + $0x38] sm:$0xff]
      %v422 = vld [vmem:[%s376 + $0x40] sm:$0xff]
      %v423 = vld [vmem:[%s376 + $0x48] sm:$0xff]
      %v424 = vld [vmem:[%s376 + $0x50] sm:$0xff]
      %v425 = vld [vmem:[%s376 + $0x58] sm:$0xff]
      %v426 = vld [vmem:[%s376 + $0x60] sm:$0xff]
      %v427 = vld [vmem:[%s376 + $0x68] sm:$0xff]
      %v428 = vld [vmem:[%s376 + $0x70] sm:$0xff]
      %v429 = vld [vmem:[%s376 + $0x78] sm:$0xff]
      %v430 = vld [vmem:[%s2] sm:$0xff]
      %v431 = vld [vmem:[%s2 + $0x8] sm:$0xff]
      %v432 = vld [vmem:[%s2 + $0x10] sm:$0xff]
      %v433 = vld [vmem:[%s2 + $0x18] sm:$0xff]
      %v434 = vld [vmem:[%s2 + $0x20] sm:$0xff]
      %v435 = vld [vmem:[%s2 + $0x28] sm:$0xff]
      %v436 = vld [vmem:[%s2 + $0x30] sm:$0xff]
      %v437 = vld [vmem:[%s2 + $0x38] sm:$0xff]
      %v438 = vld [vmem:[%s2 + $0x40] sm:$0xff]
      %v439 = vld [vmem:[%s2 + $0x48] sm:$0xff]
      %v440 = vld [vmem:[%s2 + $0x50] sm:$0xff]
      %v441 = vld [vmem:[%s2 + $0x58] sm:$0xff]
      %v442 = vld [vmem:[%s2 + $0x60] sm:$0xff]
      %v443 = vld [vmem:[%s2 + $0x68] sm:$0xff]
      %v444 = vld [vmem:[%s2 + $0x70] sm:$0xff]
      %v445 = vld [vmem:[%s2 + $0x78] sm:$0xff]
      %v446 = vld [vmem:[%s2 + $0x80] sm:$0xff]
      %v447 = vld [vmem:[%s2 + $0x88] sm:$0xff]
      %v448 = vld [vmem:[%s2 + $0x90] sm:$0xff]
      %v449 = vld [vmem:[%s2 + $0x98] sm:$0xff]
      %v450 = vld [vmem:[%s2 + $0xa0] sm:$0xff]
      %v451 = vld [vmem:[%s2 + $0xa8] sm:$0xff]
      %v452 = vld [vmem:[%s2 + $0xb0] sm:$0xff]
      %v453 = vld [vmem:[%s2 + $0xb8] sm:$0xff]
      %v454 = vld [vmem:[%s2 + $0xc0] sm:$0xff]
      %v455 = vld [vmem:[%s2 + $0xc8] sm:$0xff]
      %v456 = vld [vmem:[%s2 + $0xd0] sm:$0xff]
      %v457 = vld [vmem:[%s2 + $0xd8] sm:$0xff]
      %v458 = vld [vmem:[%s2 + $0xe0] sm:$0xff]
      %v459 = vld [vmem:[%s2 + $0xe8] sm:$0xff]
      %v460 = vld [vmem:[%s2 + $0xf0] sm:$0xff]
      %v461 = vld [vmem:[%s2 + $0xf8] sm:$0xff]
      %v462 = vld [vmem:[%s3] sm:$0x1]
      %463 = vmatprep.subr.mxu0 %v431
      %464 = vmatpush1.msra.mxu0 %v430
      %465 = vmatprep.subr.mxu0 %v433
      %466 = vmatpush1.msra.mxu0 %v432
      %467 = vmatprep.subr.mxu0 %v435
      %468 = vmatpush1.msra.mxu0 %v434
      %469 = vmatprep.subr.mxu0 %v437
      %470 = vmatpush1.msra.mxu0 %v436
      %471 = vmatprep.subr.mxu0 %v439
      %472 = vmatpush1.msra.mxu0 %v438
      %473 = vmatprep.subr.mxu0 %v441
      %474 = vmatpush1.msra.mxu0 %v440
      %475 = vmatprep.subr.mxu0 %v443
      %476 = vmatpush1.msra.mxu0 %v442
      %477 = vmatprep.subr.mxu0 %v445
      %478 = vmatpush1.msra.mxu0 %v444
      %479 = vmatprep.subr.mxu0 %v447
      %480 = vmatpush1.msra.mxu0 %v446
      %481 = vmatprep.subr.mxu0 %v449
      %482 = vmatpush1.msra.mxu0 %v448
      %483 = vmatprep.subr.mxu0 %v451
      %484 = vmatpush1.msra.mxu0 %v450
      %485 = vmatprep.subr.mxu0 %v453
      %486 = vmatpush1.msra.mxu0 %v452
      %487 = vmatprep.subr.mxu0 %v455
      %488 = vmatpush1.msra.mxu0 %v454
      %489 = vmatprep.subr.mxu0 %v457
      %490 = vmatpush1.msra.mxu0 %v456
      %491 = vmatprep.subr.mxu0 %v459
      %492 = vmatpush1.msra.mxu0 %v458
      %493 = vmatprep.subr.mxu0 %v461
      %494 = vmatpush1.msra.mxu0 %v460
      %495 = vmatprep.subr.mxu0 0.0
      %496 = vmatpush1.msra.mxu0 0.0
      %497 = vmatprep.subr.mxu0 0.0
      %498 = vmatpush1.msra.mxu0 0.0
      %499 = vmatprep.subr.mxu0 0.0
      %500 = vmatpush1.msra.mxu0 0.0
      %501 = vmatprep.subr.mxu0 0.0
      %502 = vmatpush1.msra.mxu0 0.0
      %503 = vmatprep.subr.mxu0 0.0
      %504 = vmatpush1.msra.mxu0 0.0
      %505 = vmatprep.subr.mxu0 0.0
      %506 = vmatpush1.msra.mxu0 0.0
      %507 = vmatprep.subr.mxu0 0.0
      %508 = vmatpush1.msra.mxu0 0.0
      %509 = vmatprep.subr.mxu0 0.0
      %510 = vmatpush1.msra.mxu0 0.0
      %511 = vmatprep.subr.mxu0 0.0
      %512 = vmatpush1.msra.mxu0 0.0
      %513 = vmatprep.subr.mxu0 0.0
      %514 = vmatpush1.msra.mxu0 0.0
      %515 = vmatprep.subr.mxu0 0.0
      %516 = vmatpush1.msra.mxu0 0.0
      %517 = vmatprep.subr.mxu0 0.0
      %518 = vmatpush1.msra.mxu0 0.0
      %519 = vmatprep.subr.mxu0 0.0
      %520 = vmatpush1.msra.mxu0 0.0
      %521 = vmatprep.subr.mxu0 0.0
      %522 = vmatpush1.msra.mxu0 0.0
      %523 = vmatprep.subr.mxu0 0.0
      %524 = vmatpush1.msra.mxu0 0.0
      %525 = vmatprep.subr.mxu0 0.0
      %526 = vmatpush1.msra.mxu0 0.0
      %527 = vmatprep.mubr.f32.mxu0 0.0
      %528 = vmatmul.mubr.f32.gmra.mrb[0].mxu0 %v414
      %v529 = vpop.f32.mrb[0].mxu0
      %v530 = vadd.f32 0.0, %v529
      %v531 = vpop.f32.mrb[0].mxu0
      %v532 = vadd.f32 0.0, %v531
      %533 = vmatprep.mubr.f32.mxu0 0.0
      %534 = vmatmul.mubr.f32.gmra.mrb[0].mxu0 %v415
      %v535 = vpop.f32.mrb[0].mxu0
      %v536 = vadd.f32 0.0, %v535
      %v537 = vpop.f32.mrb[0].mxu0
      %v538 = vadd.f32 0.0, %v537
      %539 = vmatprep.mubr.f32.mxu0 0.0
      %540 = vmatmul.mubr.f32.gmra.mrb[0].mxu0 %v416
      %v541 = vpop.f32.mrb[0].mxu0
      %v542 = vadd.f32 0.0, %v541
      %v543 = vpop.f32.mrb[0].mxu0
      %v544 = vadd.f32 0.0, %v543
      %545 = vmatprep.mubr.f32.mxu0 0.0
      %546 = vmatmul.mubr.f32.gmra.mrb[0].mxu0 %v417
      %v547 = vpop.f32.mrb[0].mxu0
      %v548 = vadd.f32 0.0, %v547
      %v549 = vpop.f32.mrb[0].mxu0
      %v550 = vadd.f32 0.0, %v549
      %551 = vmatprep.mubr.f32.mxu0 0.0
      %552 = vmatmul.mubr.f32.gmra.mrb[0].mxu0 %v418
      %v553 = vpop.f32.mrb[0].mxu0
      %v554 = vadd.f32 0.0, %v553
      %v555 = vpop.f32.mrb[0].mxu0
      %v556 = vadd.f32 0.0, %v555
      %557 = vmatprep.mubr.f32.mxu0 0.0
      %558 = vmatmul.mubr.f32.gmra.mrb[0].mxu0 %v419
      %v559 = vpop.f32.mrb[0].mxu0
      %v560 = vadd.f32 0.0, %v559
      %v561 = vpop.f32.mrb[0].mxu0
      %v562 = vadd.f32 0.0, %v561
      %563 = vmatprep.mubr.f32.mxu0 0.0
      %564 = vmatmul.mubr.f32.gmra.mrb[0].mxu0 %v420
      %v565 = vpop.f32.mrb[0].mxu0
      %v566 = vadd.f32 0.0, %v565
      %v567 = vpop.f32.mrb[0].mxu0
      %v568 = vadd.f32 0.0, %v567
      %569 = vmatprep.mubr.f32.mxu0 0.0
      %570 = vmatmul.mubr.f32.gmra.mrb[0].mxu0 %v421
      %v571 = vpop.f32.mrb[0].mxu0
      %v572 = vadd.f32 0.0, %v571
      %v573 = vpop.f32.mrb[0].mxu0
      %v574 = vadd.f32 0.0, %v573
      %575 = vmatprep.mubr.f32.mxu0 0.0
      %576 = vmatmul.mubr.f32.gmra.mrb[0].mxu0 %v422
      %v577 = vpop.f32.mrb[0].mxu0
      %v578 = vadd.f32 0.0, %v577
      %v579 = vpop.f32.mrb[0].mxu0
      %v580 = vadd.f32 0.0, %v579
      %581 = vmatprep.mubr.f32.mxu0 0.0
      %582 = vmatmul.mubr.f32.gmra.mrb[0].mxu0 %v423
      %v583 = vpop.f32.mrb[0].mxu0
      %v584 = vadd.f32 0.0, %v583
      %v585 = vpop.f32.mrb[0].mxu0
      %v586 = vadd.f32 0.0, %v585
      %587 = vmatprep.mubr.f32.mxu0 0.0
      %588 = vmatmul.mubr.f32.gmra.mrb[0].mxu0 %v424
      %v589 = vpop.f32.mrb[0].mxu0
      %v590 = vadd.f32 0.0, %v589
      %v591 = vpop.f32.mrb[0].mxu0
      %v592 = vadd.f32 0.0, %v591
      %593 = vmatprep.mubr.f32.mxu0 0.0
      %594 = vmatmul.mubr.f32.gmra.mrb[0].mxu0 %v425
      %v595 = vpop.f32.mrb[0].mxu0
      %v596 = vadd.f32 0.0, %v595
      %v597 = vpop.f32.mrb[0].mxu0
      %v598 = vadd.f32 0.0, %v597
      %599 = vmatprep.mubr.f32.mxu0 0.0
      %600 = vmatmul.mubr.f32.gmra.mrb[0].mxu0 %v426
      %v601 = vpop.f32.mrb[0].mxu0
      %v602 = vadd.f32 0.0, %v601
      %v603 = vpop.f32.mrb[0].mxu0
      %v604 = vadd.f32 0.0, %v603
      %605 = vmatprep.mubr.f32.mxu0 0.0
      %606 = vmatmul.mubr.f32.gmra.mrb[0].mxu0 %v427
      %v607 = vpop.f32.mrb[0].mxu0
      %v608 = vadd.f32 0.0, %v607
      %v609 = vpop.f32.mrb[0].mxu0
      %v610 = vadd.f32 0.0, %v609
      %611 = vmatprep.mubr.f32.mxu0 0.0
      %612 = vmatmul.mubr.f32.gmra.mrb[0].mxu0 %v428
      %v613 = vpop.f32.mrb[0].mxu0
      %v614 = vadd.f32 0.0, %v613
      %v615 = vpop.f32.mrb[0].mxu0
      %v616 = vadd.f32 0.0, %v615
      %617 = vmatprep.mubr.f32.mxu0 0.0
      %618 = vmatmul.mubr.f32.gmra.mrb[0].mxu0 %v429
      %v619 = vpop.f32.mrb[0].mxu0
      %v620 = vadd.f32 0.0, %v619
      %v621 = vpop.f32.mrb[0].mxu0
      %v622 = vadd.f32 0.0, %v621
      %623 = vdwg.mxu0
      %624 = vmatprep.subr.mxu0 0.0
      %625 = vmatpush1.msra.mxu0 %v532
      %626 = vmatprep.subr.mxu0 0.0
      %627 = vmatpush1.msra.mxu0 %v538
      %628 = vmatprep.subr.mxu0 0.0
      %629 = vmatpush1.msra.mxu0 %v544
      %630 = vmatprep.subr.mxu0 0.0
      %631 = vmatpush1.msra.mxu0 %v550
      %632 = vmatprep.subr.mxu0 0.0
      %633 = vmatpush1.msra.mxu0 %v556
      %634 = vmatprep.subr.mxu0 0.0
      %635 = vmatpush1.msra.mxu0 %v562
      %636 = vmatprep.subr.mxu0 0.0
      %637 = vmatpush1.msra.mxu0 %v568
      %638 = vmatprep.subr.mxu0 0.0
      %639 = vmatpush1.msra.mxu0 %v574
      %640 = vmatprep.subr.mxu0 0.0
      %641 = vmatpush1.msra.mxu0 %v580
      %642 = vmatprep.subr.mxu0 0.0
      %643 = vmatpush1.msra.mxu0 %v586
      %644 = vmatprep.subr.mxu0 0.0
      %645 = vmatpush1.msra.mxu0 %v592
      %646 = vmatprep.subr.mxu0 0.0
      %647 = vmatpush1.msra.mxu0 %v598
      %648 = vmatprep.subr.mxu0 0.0
      %649 = vmatpush1.msra.mxu0 %v604
      %650 = vmatprep.subr.mxu0 0.0
      %651 = vmatpush1.msra.mxu0 %v610
      %652 = vmatprep.subr.mxu0 0.0
      %653 = vmatpush1.msra.mxu0 %v616
      %654 = vmatprep.subr.mxu0 0.0
      %655 = vmatpush1.msra.mxu0 %v622
      %656 = vmatprep.subr.mxu0 0.0
      %657 = vmatpush1.msra.mxu0 0.0
      %658 = vmatprep.subr.mxu0 0.0
      %659 = vmatpush1.msra.mxu0 0.0
      %660 = vmatprep.subr.mxu0 0.0
      %661 = vmatpush1.msra.mxu0 0.0
      %662 = vmatprep.subr.mxu0 0.0
      %663 = vmatpush1.msra.mxu0 0.0
      %664 = vmatprep.subr.mxu0 0.0
      %665 = vmatpush1.msra.mxu0 0.0
      %666 = vmatprep.subr.mxu0 0.0
      %667 = vmatpush1.msra.mxu0 0.0
      %668 = vmatprep.subr.mxu0 0.0
      %669 = vmatpush1.msra.mxu0 0.0
      %670 = vmatprep.subr.mxu0 0.0
      %671 = vmatpush1.msra.mxu0 0.0
      %672 = vmatprep.subr.mxu0 0.0
      %673 = vmatpush1.msra.mxu0 0.0
      %674 = vmatprep.subr.mxu0 0.0
      %675 = vmatpush1.msra.mxu0 0.0
      %676 = vmatprep.subr.mxu0 0.0
      %677 = vmatpush1.msra.mxu0 0.0
      %678 = vmatprep.subr.mxu0 0.0
      %679 = vmatpush1.msra.mxu0 0.0
      %680 = vmatprep.subr.mxu0 0.0
      %681 = vmatpush1.msra.mxu0 0.0
      %682 = vmatprep.subr.mxu0 0.0
      %683 = vmatpush1.msra.mxu0 0.0
      %684 = vmatprep.subr.mxu0 0.0
      %685 = vmatpush1.msra.mxu0 0.0
      %686 = vmatprep.subr.mxu0 0.0
      %687 = vmatpush1.msra.mxu0 0.0
      %688 = vmatprep.mubr.f32.mxu0 0.0
      %689 = vmatmul.mubr.f32.gmra.mrb[0].mxu0 %v398
      %v690 = vpop.f32.mrb[0].mxu0
      %v691 = vadd.f32 0.0, %v690
      %v692 = vpop.f32.mrb[0].mxu0
      %693 = vmatprep.mubr.f32.mxu0 0.0
      %694 = vmatmul.mubr.f32.gmra.mrb[0].mxu0 %v399
      %v695 = vpop.f32.mrb[0].mxu0
      %v696 = vadd.f32 0.0, %v695
      %v697 = vpop.f32.mrb[0].mxu0
      %698 = vmatprep.mubr.f32.mxu0 0.0
      %699 = vmatmul.mubr.f32.gmra.mrb[0].mxu0 %v400
      %v700 = vpop.f32.mrb[0].mxu0
      %v701 = vadd.f32 0.0, %v700
      %v702 = vpop.f32.mrb[0].mxu0
      %703 = vmatprep.mubr.f32.mxu0 0.0
      %704 = vmatmul.mubr.f32.gmra.mrb[0].mxu0 %v401
      %v705 = vpop.f32.mrb[0].mxu0
      %v706 = vadd.f32 0.0, %v705
      %v707 = vpop.f32.mrb[0].mxu0
      %708 = vmatprep.mubr.f32.mxu0 0.0
      %709 = vmatmul.mubr.f32.gmra.mrb[0].mxu0 %v402
      %v710 = vpop.f32.mrb[0].mxu0
      %v711 = vadd.f32 0.0, %v710
      %v712 = vpop.f32.mrb[0].mxu0
      %713 = vmatprep.mubr.f32.mxu0 0.0
      %714 = vmatmul.mubr.f32.gmra.mrb[0].mxu0 %v403
      %v715 = vpop.f32.mrb[0].mxu0
      %v716 = vadd.f32 0.0, %v715
      %v717 = vpop.f32.mrb[0].mxu0
      %718 = vmatprep.mubr.f32.mxu0 0.0
      %719 = vmatmul.mubr.f32.gmra.mrb[0].mxu0 %v404
      %v720 = vpop.f32.mrb[0].mxu0
      %v721 = vadd.f32 0.0, %v720
      %v722 = vpop.f32.mrb[0].mxu0
      %723 = vmatprep.mubr.f32.mxu0 0.0
      %724 = vmatmul.mubr.f32.gmra.mrb[0].mxu0 %v405
      %v725 = vpop.f32.mrb[0].mxu0
      %v726 = vadd.f32 0.0, %v725
      %v727 = vpop.f32.mrb[0].mxu0
      %728 = vmatprep.mubr.f32.mxu0 0.0
      %729 = vmatmul.mubr.f32.gmra.mrb[0].mxu0 %v406
      %v730 = vpop.f32.mrb[0].mxu0
      %v731 = vadd.f32 0.0, %v730
      %v732 = vpop.f32.mrb[0].mxu0
      %733 = vmatprep.mubr.f32.mxu0 0.0
      %734 = vmatmul.mubr.f32.gmra.mrb[0].mxu0 %v407
      %v735 = vpop.f32.mrb[0].mxu0
      %v736 = vadd.f32 0.0, %v735
      %v737 = vpop.f32.mrb[0].mxu0
      %738 = vmatprep.mubr.f32.mxu0 0.0
      %739 = vmatmul.mubr.f32.gmra.mrb[0].mxu0 %v408
      %v740 = vpop.f32.mrb[0].mxu0
      %v741 = vadd.f32 0.0, %v740
      %v742 = vpop.f32.mrb[0].mxu0
      %743 = vmatprep.mubr.f32.mxu0 0.0
      %744 = vmatmul.mubr.f32.gmra.mrb[0].mxu0 %v409
      %v745 = vpop.f32.mrb[0].mxu0
      %v746 = vadd.f32 0.0, %v745
      %v747 = vpop.f32.mrb[0].mxu0
      %748 = vmatprep.mubr.f32.mxu0 0.0
      %749 = vmatmul.mubr.f32.gmra.mrb[0].mxu0 %v410
      %v750 = vpop.f32.mrb[0].mxu0
      %v751 = vadd.f32 0.0, %v750
      %v752 = vpop.f32.mrb[0].mxu0
      %753 = vmatprep.mubr.f32.mxu0 0.0
      %754 = vmatmul.mubr.f32.gmra.mrb[0].mxu0 %v411
      %v755 = vpop.f32.mrb[0].mxu0
      %v756 = vadd.f32 0.0, %v755
      %v757 = vpop.f32.mrb[0].mxu0
      %758 = vmatprep.mubr.f32.mxu0 0.0
      %759 = vmatmul.mubr.f32.gmra.mrb[0].mxu0 %v412
      %v760 = vpop.f32.mrb[0].mxu0
      %v761 = vadd.f32 0.0, %v760
      %v762 = vpop.f32.mrb[0].mxu0
      %763 = vmatprep.mubr.f32.mxu0 0.0
      %764 = vmatmul.mubr.f32.gmra.mrb[0].mxu0 %v413
      %v765 = vpop.f32.mrb[0].mxu0
      %v766 = vadd.f32 0.0, %v765
      %v767 = vpop.f32.mrb[0].mxu0
      %768 = vdwg.mxu0
      %v769 = vadd.f32 %v530, %v691
      %v770 = vadd.f32 %v536, %v696
      %v771 = vadd.f32 %v542, %v701
      %v772 = vadd.f32 %v548, %v706
      %v773 = vadd.f32 %v554, %v711
      %v774 = vadd.f32 %v560, %v716
      %v775 = vadd.f32 %v566, %v721
      %v776 = vadd.f32 %v572, %v726
      %v777 = vadd.f32 %v578, %v731
      %v778 = vadd.f32 %v584, %v736
      %v779 = vadd.f32 %v590, %v741
      %v780 = vadd.f32 %v596, %v746
      %v781 = vadd.f32 %v602, %v751
      %v782 = vadd.f32 %v608, %v756
      %v783 = vadd.f32 %v614, %v761
      %v784 = vadd.f32 %v620, %v766
      %v786 = vlaneseq
      %v787 = vshrl.u32 %v786, 7
      %v788 = vsub.s32 0, %v787
      %v789 = vrot.slane %v462, %v788
      %v791 = vadd.f32 %v769, %v789
      %v792 = vadd.f32 %v770, %v789
      %v793 = vadd.f32 %v771, %v789
      %v794 = vadd.f32 %v772, %v789
      %v795 = vadd.f32 %v773, %v789
      %v796 = vadd.f32 %v774, %v789
      %v797 = vadd.f32 %v775, %v789
      %v798 = vadd.f32 %v776, %v789
      %v799 = vadd.f32 %v777, %v789
      %v800 = vadd.f32 %v778, %v789
      %v801 = vadd.f32 %v779, %v789
      %v802 = vadd.f32 %v780, %v789
      %v803 = vadd.f32 %v781, %v789
      %v804 = vadd.f32 %v782, %v789
      %v805 = vadd.f32 %v783, %v789
      %v806 = vadd.f32 %v784, %v789
      %v807 = vmax.f32 %v791, 0.0
      %v808 = vmax.f32 %v792, 0.0
      %v809 = vmax.f32 %v793, 0.0
      %v810 = vmax.f32 %v794, 0.0
      %v811 = vmax.f32 %v795, 0.0
      %v812 = vmax.f32 %v796, 0.0
      %v813 = vmax.f32 %v797, 0.0
      %v814 = vmax.f32 %v798, 0.0
      %v815 = vmax.f32 %v799, 0.0
      %v816 = vmax.f32 %v800, 0.0
      %v817 = vmax.f32 %v801, 0.0
      %v818 = vmax.f32 %v802, 0.0
      %v819 = vmax.f32 %v803, 0.0
      %v820 = vmax.f32 %v804, 0.0
      %v821 = vmax.f32 %v805, 0.0
      %v822 = vmax.f32 %v806, 0.0
      %v823 = vld [vmem:[%s4] sm:$0xff]
      %v824 = vld [vmem:[%s4 + $0x8] sm:$0xff]
      %v825 = vld [vmem:[%s4 + $0x10] sm:$0xff]
      %v826 = vld [vmem:[%s4 + $0x18] sm:$0xff]
      %v827 = vld [vmem:[%s4 + $0x20] sm:$0xff]
      %v828 = vld [vmem:[%s4 + $0x28] sm:$0xff]
      %v829 = vld [vmem:[%s4 + $0x30] sm:$0xff]
      %v830 = vld [vmem:[%s4 + $0x38] sm:$0xff]
      %v831 = vld [vmem:[%s4 + $0x40] sm:$0xff]
      %v832 = vld [vmem:[%s4 + $0x48] sm:$0xff]
      %v833 = vld [vmem:[%s4 + $0x50] sm:$0xff]
      %v834 = vld [vmem:[%s4 + $0x58] sm:$0xff]
      %v835 = vld [vmem:[%s4 + $0x60] sm:$0xff]
      %v836 = vld [vmem:[%s4 + $0x68] sm:$0xff]
      %v837 = vld [vmem:[%s4 + $0x70] sm:$0xff]
      %v838 = vld [vmem:[%s4 + $0x78] sm:$0xff]
      %v839 = vld [vmem:[%s4 + $0x80] sm:$0xff]
      %v840 = vld [vmem:[%s4 + $0x88] sm:$0xff]
      %v841 = vld [vmem:[%s4 + $0x90] sm:$0xff]
      %v842 = vld [vmem:[%s4 + $0x98] sm:$0xff]
      %v843 = vld [vmem:[%s4 + $0xa0] sm:$0xff]
      %v844 = vld [vmem:[%s4 + $0xa8] sm:$0xff]
      %v845 = vld [vmem:[%s4 + $0xb0] sm:$0xff]
      %v846 = vld [vmem:[%s4 + $0xb8] sm:$0xff]
      %v847 = vld [vmem:[%s4 + $0xc0] sm:$0xff]
      %v848 = vld [vmem:[%s4 + $0xc8] sm:$0xff]
      %v849 = vld [vmem:[%s4 + $0xd0] sm:$0xff]
      %v850 = vld [vmem:[%s4 + $0xd8] sm:$0xff]
      %v851 = vld [vmem:[%s4 + $0xe0] sm:$0xff]
      %v852 = vld [vmem:[%s4 + $0xe8] sm:$0xff]
      %v853 = vld [vmem:[%s4 + $0xf0] sm:$0xff]
      %v854 = vld [vmem:[%s4 + $0xf8] sm:$0xff]
      %v855 = vld [vmem:[%s5] sm:$0x1]
      %856 = vmatprep.subr.mxu0 %v824
      %857 = vmatpush1.msra.mxu0 %v823
      %858 = vmatprep.subr.mxu0 %v826
      %859 = vmatpush1.msra.mxu0 %v825
      %860 = vmatprep.subr.mxu0 %v828
      %861 = vmatpush1.msra.mxu0 %v827
      %862 = vmatprep.subr.mxu0 %v830
      %863 = vmatpush1.msra.mxu0 %v829
      %864 = vmatprep.subr.mxu0 %v832
      %865 = vmatpush1.msra.mxu0 %v831
      %866 = vmatprep.subr.mxu0 %v834
      %867 = vmatpush1.msra.mxu0 %v833
      %868 = vmatprep.subr.mxu0 %v836
      %869 = vmatpush1.msra.mxu0 %v835
      %870 = vmatprep.subr.mxu0 %v838
      %871 = vmatpush1.msra.mxu0 %v837
      %872 = vmatprep.subr.mxu0 %v840
      %873 = vmatpush1.msra.mxu0 %v839
      %874 = vmatprep.subr.mxu0 %v842
      %875 = vmatpush1.msra.mxu0 %v841
      %876 = vmatprep.subr.mxu0 %v844
      %877 = vmatpush1.msra.mxu0 %v843
      %878 = vmatprep.subr.mxu0 %v846
      %879 = vmatpush1.msra.mxu0 %v845
      %880 = vmatprep.subr.mxu0 %v848
      %881 = vmatpush1.msra.mxu0 %v847
      %882 = vmatprep.subr.mxu0 %v850
      %883 = vmatpush1.msra.mxu0 %v849
      %884 = vmatprep.subr.mxu0 %v852
      %885 = vmatpush1.msra.mxu0 %v851
      %886 = vmatprep.subr.mxu0 %v854
      %887 = vmatpush1.msra.mxu0 %v853
      %888 = vmatprep.subr.mxu0 0.0
      %889 = vmatpush1.msra.mxu0 0.0
      %890 = vmatprep.subr.mxu0 0.0
      %891 = vmatpush1.msra.mxu0 0.0
      %892 = vmatprep.subr.mxu0 0.0
      %893 = vmatpush1.msra.mxu0 0.0
      %894 = vmatprep.subr.mxu0 0.0
      %895 = vmatpush1.msra.mxu0 0.0
      %896 = vmatprep.subr.mxu0 0.0
      %897 = vmatpush1.msra.mxu0 0.0
      %898 = vmatprep.subr.mxu0 0.0
      %899 = vmatpush1.msra.mxu0 0.0
      %900 = vmatprep.subr.mxu0 0.0
      %901 = vmatpush1.msra.mxu0 0.0
      %902 = vmatprep.subr.mxu0 0.0
      %903 = vmatpush1.msra.mxu0 0.0
      %904 = vmatprep.subr.mxu0 0.0
      %905 = vmatpush1.msra.mxu0 0.0
      %906 = vmatprep.subr.mxu0 0.0
      %907 = vmatpush1.msra.mxu0 0.0
      %908 = vmatprep.subr.mxu0 0.0
      %909 = vmatpush1.msra.mxu0 0.0
      %910 = vmatprep.subr.mxu0 0.0
      %911 = vmatpush1.msra.mxu0 0.0
      %912 = vmatprep.subr.mxu0 0.0
      %913 = vmatpush1.msra.mxu0 0.0
      %914 = vmatprep.subr.mxu0 0.0
      %915 = vmatpush1.msra.mxu0 0.0
      %916 = vmatprep.subr.mxu0 0.0
      %917 = vmatpush1.msra.mxu0 0.0
      %918 = vmatprep.subr.mxu0 0.0
      %919 = vmatpush1.msra.mxu0 0.0
      %920 = vmatprep.mubr.f32.mxu0 0.0
      %921 = vmatmul.mubr.f32.gmra.mrb[0].mxu0 %v807
      %v922 = vpop.f32.mrb[0].mxu0
      %v923 = vadd.f32 0.0, %v922
      %v924 = vpop.f32.mrb[0].mxu0
      %v925 = vadd.f32 0.0, %v924
      %926 = vmatprep.mubr.f32.mxu0 0.0
      %927 = vmatmul.mubr.f32.gmra.mrb[0].mxu0 %v808
      %v928 = vpop.f32.mrb[0].mxu0
      %v929 = vadd.f32 0.0, %v928
      %v930 = vpop.f32.mrb[0].mxu0
      %v931 = vadd.f32 0.0, %v930
      %932 = vmatprep.mubr.f32.mxu0 0.0
      %933 = vmatmul.mubr.f32.gmra.mrb[0].mxu0 %v809
      %v934 = vpop.f32.mrb[0].mxu0
      %v935 = vadd.f32 0.0, %v934
      %v936 = vpop.f32.mrb[0].mxu0
      %v937 = vadd.f32 0.0, %v936
      %938 = vmatprep.mubr.f32.mxu0 0.0
      %939 = vmatmul.mubr.f32.gmra.mrb[0].mxu0 %v810
      %v940 = vpop.f32.mrb[0].mxu0
      %v941 = vadd.f32 0.0, %v940
      %v942 = vpop.f32.mrb[0].mxu0
      %v943 = vadd.f32 0.0, %v942
      %944 = vmatprep.mubr.f32.mxu0 0.0
      %945 = vmatmul.mubr.f32.gmra.mrb[0].mxu0 %v811
      %v946 = vpop.f32.mrb[0].mxu0
      %v947 = vadd.f32 0.0, %v946
      %v948 = vpop.f32.mrb[0].mxu0
      %v949 = vadd.f32 0.0, %v948
      %950 = vmatprep.mubr.f32.mxu0 0.0
      %951 = vmatmul.mubr.f32.gmra.mrb[0].mxu0 %v812
      %v952 = vpop.f32.mrb[0].mxu0
      %v953 = vadd.f32 0.0, %v952
      %v954 = vpop.f32.mrb[0].mxu0
      %v955 = vadd.f32 0.0, %v954
      %956 = vmatprep.mubr.f32.mxu0 0.0
      %957 = vmatmul.mubr.f32.gmra.mrb[0].mxu0 %v813
      %v958 = vpop.f32.mrb[0].mxu0
      %v959 = vadd.f32 0.0, %v958
      %v960 = vpop.f32.mrb[0].mxu0
      %v961 = vadd.f32 0.0, %v960
      %962 = vmatprep.mubr.f32.mxu0 0.0
      %963 = vmatmul.mubr.f32.gmra.mrb[0].mxu0 %v814
      %v964 = vpop.f32.mrb[0].mxu0
      %v965 = vadd.f32 0.0, %v964
      %v966 = vpop.f32.mrb[0].mxu0
      %v967 = vadd.f32 0.0, %v966
      %968 = vmatprep.mubr.f32.mxu0 0.0
      %969 = vmatmul.mubr.f32.gmra.mrb[0].mxu0 %v815
      %v970 = vpop.f32.mrb[0].mxu0
      %v971 = vadd.f32 0.0, %v970
      %v972 = vpop.f32.mrb[0].mxu0
      %v973 = vadd.f32 0.0, %v972
      %974 = vmatprep.mubr.f32.mxu0 0.0
      %975 = vmatmul.mubr.f32.gmra.mrb[0].mxu0 %v816
      %v976 = vpop.f32.mrb[0].mxu0
      %v977 = vadd.f32 0.0, %v976
      %v978 = vpop.f32.mrb[0].mxu0
      %v979 = vadd.f32 0.0, %v978
      %980 = vmatprep.mubr.f32.mxu0 0.0
      %981 = vmatmul.mubr.f32.gmra.mrb[0].mxu0 %v817
      %v982 = vpop.f32.mrb[0].mxu0
      %v983 = vadd.f32 0.0, %v982
      %v984 = vpop.f32.mrb[0].mxu0
      %v985 = vadd.f32 0.0, %v984
      %986 = vmatprep.mubr.f32.mxu0 0.0
      %987 = vmatmul.mubr.f32.gmra.mrb[0].mxu0 %v818
      %v988 = vpop.f32.mrb[0].mxu0
      %v989 = vadd.f32 0.0, %v988
      %v990 = vpop.f32.mrb[0].mxu0
      %v991 = vadd.f32 0.0, %v990
      %992 = vmatprep.mubr.f32.mxu0 0.0
      %993 = vmatmul.mubr.f32.gmra.mrb[0].mxu0 %v819
      %v994 = vpop.f32.mrb[0].mxu0
      %v995 = vadd.f32 0.0, %v994
      %v996 = vpop.f32.mrb[0].mxu0
      %v997 = vadd.f32 0.0, %v996
      %998 = vmatprep.mubr.f32.mxu0 0.0
      %999 = vmatmul.mubr.f32.gmra.mrb[0].mxu0 %v820
      %v1000 = vpop.f32.mrb[0].mxu0
      %v1001 = vadd.f32 0.0, %v1000
      %v1002 = vpop.f32.mrb[0].mxu0
      %v1003 = vadd.f32 0.0, %v1002
      %1004 = vmatprep.mubr.f32.mxu0 0.0
      %1005 = vmatmul.mubr.f32.gmra.mrb[0].mxu0 %v821
      %v1006 = vpop.f32.mrb[0].mxu0
      %v1007 = vadd.f32 0.0, %v1006
      %v1008 = vpop.f32.mrb[0].mxu0
      %v1009 = vadd.f32 0.0, %v1008
      %1010 = vmatprep.mubr.f32.mxu0 0.0
      %1011 = vmatmul.mubr.f32.gmra.mrb[0].mxu0 %v822
      %v1012 = vpop.f32.mrb[0].mxu0
      %v1013 = vadd.f32 0.0, %v1012
      %v1014 = vpop.f32.mrb[0].mxu0
      %v1015 = vadd.f32 0.0, %v1014
      %1016 = vdwg.mxu0
      %1017 = vmatprep.subr.mxu0 0.0
      %1018 = vmatpush1.msra.mxu0 %v925
      %1019 = vmatprep.subr.mxu0 0.0
      %1020 = vmatpush1.msra.mxu0 %v931
      %1021 = vmatprep.subr.mxu0 0.0
      %1022 = vmatpush1.msra.mxu0 %v937
      %1023 = vmatprep.subr.mxu0 0.0
      %1024 = vmatpush1.msra.mxu0 %v943
      %1025 = vmatprep.subr.mxu0 0.0
      %1026 = vmatpush1.msra.mxu0 %v949
      %1027 = vmatprep.subr.mxu0 0.0
      %1028 = vmatpush1.msra.mxu0 %v955
      %1029 = vmatprep.subr.mxu0 0.0
      %1030 = vmatpush1.msra.mxu0 %v961
      %1031 = vmatprep.subr.mxu0 0.0
      %1032 = vmatpush1.msra.mxu0 %v967
      %1033 = vmatprep.subr.mxu0 0.0
      %1034 = vmatpush1.msra.mxu0 %v973
      %1035 = vmatprep.subr.mxu0 0.0
      %1036 = vmatpush1.msra.mxu0 %v979
      %1037 = vmatprep.subr.mxu0 0.0
      %1038 = vmatpush1.msra.mxu0 %v985
      %1039 = vmatprep.subr.mxu0 0.0
      %1040 = vmatpush1.msra.mxu0 %v991
      %1041 = vmatprep.subr.mxu0 0.0
      %1042 = vmatpush1.msra.mxu0 %v997
      %1043 = vmatprep.subr.mxu0 0.0
      %1044 = vmatpush1.msra.mxu0 %v1003
      %1045 = vmatprep.subr.mxu0 0.0
      %1046 = vmatpush1.msra.mxu0 %v1009
      %1047 = vmatprep.subr.mxu0 0.0
      %1048 = vmatpush1.msra.mxu0 %v1015
      %1049 = vmatprep.subr.mxu0 0.0
      %1050 = vmatpush1.msra.mxu0 0.0
      %1051 = vmatprep.subr.mxu0 0.0
      %1052 = vmatpush1.msra.mxu0 0.0
      %1053 = vmatprep.subr.mxu0 0.0
      %1054 = vmatpush1.msra.mxu0 0.0
      %1055 = vmatprep.subr.mxu0 0.0
      %1056 = vmatpush1.msra.mxu0 0.0
      %1057 = vmatprep.subr.mxu0 0.0
      %1058 = vmatpush1.msra.mxu0 0.0
      %1059 = vmatprep.subr.mxu0 0.0
      %1060 = vmatpush1.msra.mxu0 0.0
      %1061 = vmatprep.subr.mxu0 0.0
      %1062 = vmatpush1.msra.mxu0 0.0
      %1063 = vmatprep.subr.mxu0 0.0
      %1064 = vmatpush1.msra.mxu0 0.0
      %1065 = vmatprep.subr.mxu0 0.0
      %1066 = vmatpush1.msra.mxu0 0.0
      %1067 = vmatprep.subr.mxu0 0.0
      %1068 = vmatpush1.msra.mxu0 0.0
      %1069 = vmatprep.subr.mxu0 0.0
      %1070 = vmatpush1.msra.mxu0 0.0
      %1071 = vmatprep.subr.mxu0 0.0
      %1072 = vmatpush1.msra.mxu0 0.0
      %1073 = vmatprep.subr.mxu0 0.0
      %1074 = vmatpush1.msra.mxu0 0.0
      %1075 = vmatprep.subr.mxu0 0.0
      %1076 = vmatpush1.msra.mxu0 0.0
      %1077 = vmatprep.subr.mxu0 0.0
      %1078 = vmatpush1.msra.mxu0 0.0
      %1079 = vmatprep.subr.mxu0 0.0
      %1080 = vmatpush1.msra.mxu0 0.0
      %1081 = vmatprep.mubr.f32.mxu0 0.0
      %1082 = vmatmul.mubr.f32.gmra.mrb[0].mxu0 %v398
      %v1083 = vpop.f32.mrb[0].mxu0
      %v1084 = vadd.f32 0.0, %v1083
      %v1085 = vpop.f32.mrb[0].mxu0
      %1086 = vmatprep.mubr.f32.mxu0 0.0
      %1087 = vmatmul.mubr.f32.gmra.mrb[0].mxu0 %v399
      %v1088 = vpop.f32.mrb[0].mxu0
      %v1089 = vadd.f32 0.0, %v1088
      %v1090 = vpop.f32.mrb[0].mxu0
      %1091 = vmatprep.mubr.f32.mxu0 0.0
      %1092 = vmatmul.mubr.f32.gmra.mrb[0].mxu0 %v400
      %v1093 = vpop.f32.mrb[0].mxu0
      %v1094 = vadd.f32 0.0, %v1093
      %v1095 = vpop.f32.mrb[0].mxu0
      %1096 = vmatprep.mubr.f32.mxu0 0.0
      %1097 = vmatmul.mubr.f32.gmra.mrb[0].mxu0 %v401
      %v1098 = vpop.f32.mrb[0].mxu0
      %v1099 = vadd.f32 0.0, %v1098
      %v1100 = vpop.f32.mrb[0].mxu0
      %1101 = vmatprep.mubr.f32.mxu0 0.0
      %1102 = vmatmul.mubr.f32.gmra.mrb[0].mxu0 %v402
      %v1103 = vpop.f32.mrb[0].mxu0
      %v1104 = vadd.f32 0.0, %v1103
      %v1105 = vpop.f32.mrb[0].mxu0
      %1106 = vmatprep.mubr.f32.mxu0 0.0
      %1107 = vmatmul.mubr.f32.gmra.mrb[0].mxu0 %v403
      %v1108 = vpop.f32.mrb[0].mxu0
      %v1109 = vadd.f32 0.0, %v1108
      %v1110 = vpop.f32.mrb[0].mxu0
      %1111 = vmatprep.mubr.f32.mxu0 0.0
      %1112 = vmatmul.mubr.f32.gmra.mrb[0].mxu0 %v404
      %v1113 = vpop.f32.mrb[0].mxu0
      %v1114 = vadd.f32 0.0, %v1113
      %v1115 = vpop.f32.mrb[0].mxu0
      %1116 = vmatprep.mubr.f32.mxu0 0.0
      %1117 = vmatmul.mubr.f32.gmra.mrb[0].mxu0 %v405
      %v1118 = vpop.f32.mrb[0].mxu0
      %v1119 = vadd.f32 0.0, %v1118
      %v1120 = vpop.f32.mrb[0].mxu0
      %1121 = vmatprep.mubr.f32.mxu0 0.0
      %1122 = vmatmul.mubr.f32.gmra.mrb[0].mxu0 %v406
      %v1123 = vpop.f32.mrb[0].mxu0
      %v1124 = vadd.f32 0.0, %v1123
      %v1125 = vpop.f32.mrb[0].mxu0
      %1126 = vmatprep.mubr.f32.mxu0 0.0
      %1127 = vmatmul.mubr.f32.gmra.mrb[0].mxu0 %v407
      %v1128 = vpop.f32.mrb[0].mxu0
      %v1129 = vadd.f32 0.0, %v1128
      %v1130 = vpop.f32.mrb[0].mxu0
      %1131 = vmatprep.mubr.f32.mxu0 0.0
      %1132 = vmatmul.mubr.f32.gmra.mrb[0].mxu0 %v408
      %v1133 = vpop.f32.mrb[0].mxu0
      %v1134 = vadd.f32 0.0, %v1133
      %v1135 = vpop.f32.mrb[0].mxu0
      %1136 = vmatprep.mubr.f32.mxu0 0.0
      %1137 = vmatmul.mubr.f32.gmra.mrb[0].mxu0 %v409
      %v1138 = vpop.f32.mrb[0].mxu0
      %v1139 = vadd.f32 0.0, %v1138
      %v1140 = vpop.f32.mrb[0].mxu0
      %1141 = vmatprep.mubr.f32.mxu0 0.0
      %1142 = vmatmul.mubr.f32.gmra.mrb[0].mxu0 %v410
      %v1143 = vpop.f32.mrb[0].mxu0
      %v1144 = vadd.f32 0.0, %v1143
      %v1145 = vpop.f32.mrb[0].mxu0
      %1146 = vmatprep.mubr.f32.mxu0 0.0
      %1147 = vmatmul.mubr.f32.gmra.mrb[0].mxu0 %v411
      %v1148 = vpop.f32.mrb[0].mxu0
      %v1149 = vadd.f32 0.0, %v1148
      %v1150 = vpop.f32.mrb[0].mxu0
      %1151 = vmatprep.mubr.f32.mxu0 0.0
      %1152 = vmatmul.mubr.f32.gmra.mrb[0].mxu0 %v412
      %v1153 = vpop.f32.mrb[0].mxu0
      %v1154 = vadd.f32 0.0, %v1153
      %v1155 = vpop.f32.mrb[0].mxu0
      %1156 = vmatprep.mubr.f32.mxu0 0.0
      %1157 = vmatmul.mubr.f32.gmra.mrb[0].mxu0 %v413
      %v1158 = vpop.f32.mrb[0].mxu0
      %v1159 = vadd.f32 0.0, %v1158
      %v1160 = vpop.f32.mrb[0].mxu0
      %1161 = vdwg.mxu0
      %v1162 = vadd.f32 %v923, %v1084
      %v1163 = vadd.f32 %v929, %v1089
      %v1164 = vadd.f32 %v935, %v1094
      %v1165 = vadd.f32 %v941, %v1099
      %v1166 = vadd.f32 %v947, %v1104
      %v1167 = vadd.f32 %v953, %v1109
      %v1168 = vadd.f32 %v959, %v1114
      %v1169 = vadd.f32 %v965, %v1119
      %v1170 = vadd.f32 %v971, %v1124
      %v1171 = vadd.f32 %v977, %v1129
      %v1172 = vadd.f32 %v983, %v1134
      %v1173 = vadd.f32 %v989, %v1139
      %v1174 = vadd.f32 %v995, %v1144
      %v1175 = vadd.f32 %v1001, %v1149
      %v1176 = vadd.f32 %v1007, %v1154
      %v1177 = vadd.f32 %v1013, %v1159
      %v1179 = vlaneseq
      %v1180 = vshrl.u32 %v1179, 7
      %v1181 = vsub.s32 0, %v1180
      %v1182 = vrot.slane %v855, %v1181
      %v1184 = vadd.f32 %v1162, %v1182
      %v1185 = vadd.f32 %v1163, %v1182
      %v1186 = vadd.f32 %v1164, %v1182
      %v1187 = vadd.f32 %v1165, %v1182
      %v1188 = vadd.f32 %v1166, %v1182
      %v1189 = vadd.f32 %v1167, %v1182
      %v1190 = vadd.f32 %v1168, %v1182
      %v1191 = vadd.f32 %v1169, %v1182
      %v1192 = vadd.f32 %v1170, %v1182
      %v1193 = vadd.f32 %v1171, %v1182
      %v1194 = vadd.f32 %v1172, %v1182
      %v1195 = vadd.f32 %v1173, %v1182
      %v1196 = vadd.f32 %v1174, %v1182
      %v1197 = vadd.f32 %v1175, %v1182
      %v1198 = vadd.f32 %v1176, %v1182
      %v1199 = vadd.f32 %v1177, %v1182
      %v1200 = vmax.f32 %v1184, 0.0
      %v1201 = vmax.f32 %v1185, 0.0
      %v1202 = vmax.f32 %v1186, 0.0
      %v1203 = vmax.f32 %v1187, 0.0
      %v1204 = vmax.f32 %v1188, 0.0
      %v1205 = vmax.f32 %v1189, 0.0
      %v1206 = vmax.f32 %v1190, 0.0
      %v1207 = vmax.f32 %v1191, 0.0
      %v1208 = vmax.f32 %v1192, 0.0
      %v1209 = vmax.f32 %v1193, 0.0
      %v1210 = vmax.f32 %v1194, 0.0
      %v1211 = vmax.f32 %v1195, 0.0
      %v1212 = vmax.f32 %v1196, 0.0
      %v1213 = vmax.f32 %v1197, 0.0
      %v1214 = vmax.f32 %v1198, 0.0
      %v1215 = vmax.f32 %v1199, 0.0
      %v1216 = vld [vmem:[%s6] sm:$0xff]
      %v1217 = vld [vmem:[%s6 + $0x8] sm:$0xff]
      %v1218 = vld [vmem:[%s6 + $0x10] sm:$0xff]
      %v1219 = vld [vmem:[%s6 + $0x18] sm:$0xff]
      %v1220 = vld [vmem:[%s6 + $0x20] sm:$0xff]
      %v1221 = vld [vmem:[%s6 + $0x28] sm:$0xff]
      %v1222 = vld [vmem:[%s6 + $0x30] sm:$0xff]
      %v1223 = vld [vmem:[%s6 + $0x38] sm:$0xff]
      %v1224 = vld [vmem:[%s6 + $0x40] sm:$0xff]
      %v1225 = vld [vmem:[%s6 + $0x48] sm:$0xff]
      %v1226 = vld [vmem:[%s6 + $0x50] sm:$0xff]
      %v1227 = vld [vmem:[%s6 + $0x58] sm:$0xff]
      %v1228 = vld [vmem:[%s6 + $0x60] sm:$0xff]
      %v1229 = vld [vmem:[%s6 + $0x68] sm:$0xff]
      %v1230 = vld [vmem:[%s6 + $0x70] sm:$0xff]
      %v1231 = vld [vmem:[%s6 + $0x78] sm:$0xff]
      %v1232 = vld [vmem:[%s6 + $0x80] sm:$0xff]
      %v1233 = vld [vmem:[%s6 + $0x88] sm:$0xff]
      %v1234 = vld [vmem:[%s6 + $0x90] sm:$0xff]
      %v1235 = vld [vmem:[%s6 + $0x98] sm:$0xff]
      %v1236 = vld [vmem:[%s6 + $0xa0] sm:$0xff]
      %v1237 = vld [vmem:[%s6 + $0xa8] sm:$0xff]
      %v1238 = vld [vmem:[%s6 + $0xb0] sm:$0xff]
      %v1239 = vld [vmem:[%s6 + $0xb8] sm:$0xff]
      %v1240 = vld [vmem:[%s6 + $0xc0] sm:$0xff]
      %v1241 = vld [vmem:[%s6 + $0xc8] sm:$0xff]
      %v1242 = vld [vmem:[%s6 + $0xd0] sm:$0xff]
      %v1243 = vld [vmem:[%s6 + $0xd8] sm:$0xff]
      %v1244 = vld [vmem:[%s6 + $0xe0] sm:$0xff]
      %v1245 = vld [vmem:[%s6 + $0xe8] sm:$0xff]
      %v1246 = vld [vmem:[%s6 + $0xf0] sm:$0xff]
      %v1247 = vld [vmem:[%s6 + $0xf8] sm:$0xff]
      %v1248 = vld [vmem:[%s7] sm:$0x1]
      %1249 = vmatprep.subr.mxu0 %v1217
      %1250 = vmatpush1.msra.mxu0 %v1216
      %1251 = vmatprep.subr.mxu0 %v1219
      %1252 = vmatpush1.msra.mxu0 %v1218
      %1253 = vmatprep.subr.mxu0 %v1221
      %1254 = vmatpush1.msra.mxu0 %v1220
      %1255 = vmatprep.subr.mxu0 %v1223
      %1256 = vmatpush1.msra.mxu0 %v1222
      %1257 = vmatprep.subr.mxu0 %v1225
      %1258 = vmatpush1.msra.mxu0 %v1224
      %1259 = vmatprep.subr.mxu0 %v1227
      %1260 = vmatpush1.msra.mxu0 %v1226
      %1261 = vmatprep.subr.mxu0 %v1229
      %1262 = vmatpush1.msra.mxu0 %v1228
      %1263 = vmatprep.subr.mxu0 %v1231
      %1264 = vmatpush1.msra.mxu0 %v1230
      %1265 = vmatprep.subr.mxu0 %v1233
      %1266 = vmatpush1.msra.mxu0 %v1232
      %1267 = vmatprep.subr.mxu0 %v1235
      %1268 = vmatpush1.msra.mxu0 %v1234
      %1269 = vmatprep.subr.mxu0 %v1237
      %1270 = vmatpush1.msra.mxu0 %v1236
      %1271 = vmatprep.subr.mxu0 %v1239
      %1272 = vmatpush1.msra.mxu0 %v1238
      %1273 = vmatprep.subr.mxu0 %v1241
      %1274 = vmatpush1.msra.mxu0 %v1240
      %1275 = vmatprep.subr.mxu0 %v1243
      %1276 = vmatpush1.msra.mxu0 %v1242
      %1277 = vmatprep.subr.mxu0 %v1245
      %1278 = vmatpush1.msra.mxu0 %v1244
      %1279 = vmatprep.subr.mxu0 %v1247
      %1280 = vmatpush1.msra.mxu0 %v1246
      %1281 = vmatprep.subr.mxu0 0.0
      %1282 = vmatpush1.msra.mxu0 0.0
      %1283 = vmatprep.subr.mxu0 0.0
      %1284 = vmatpush1.msra.mxu0 0.0
      %1285 = vmatprep.subr.mxu0 0.0
      %1286 = vmatpush1.msra.mxu0 0.0
      %1287 = vmatprep.subr.mxu0 0.0
      %1288 = vmatpush1.msra.mxu0 0.0
      %1289 = vmatprep.subr.mxu0 0.0
      %1290 = vmatpush1.msra.mxu0 0.0
      %1291 = vmatprep.subr.mxu0 0.0
      %1292 = vmatpush1.msra.mxu0 0.0
      %1293 = vmatprep.subr.mxu0 0.0
      %1294 = vmatpush1.msra.mxu0 0.0
      %1295 = vmatprep.subr.mxu0 0.0
      %1296 = vmatpush1.msra.mxu0 0.0
      %1297 = vmatprep.subr.mxu0 0.0
      %1298 = vmatpush1.msra.mxu0 0.0
      %1299 = vmatprep.subr.mxu0 0.0
      %1300 = vmatpush1.msra.mxu0 0.0
      %1301 = vmatprep.subr.mxu0 0.0
      %1302 = vmatpush1.msra.mxu0 0.0
      %1303 = vmatprep.subr.mxu0 0.0
      %1304 = vmatpush1.msra.mxu0 0.0
      %1305 = vmatprep.subr.mxu0 0.0
      %1306 = vmatpush1.msra.mxu0 0.0
      %1307 = vmatprep.subr.mxu0 0.0
      %1308 = vmatpush1.msra.mxu0 0.0
      %1309 = vmatprep.subr.mxu0 0.0
      %1310 = vmatpush1.msra.mxu0 0.0
      %1311 = vmatprep.subr.mxu0 0.0
      %1312 = vmatpush1.msra.mxu0 0.0
      %1313 = vmatprep.mubr.f32.mxu0 0.0
      %1314 = vmatmul.mubr.f32.gmra.mrb[0].mxu0 %v1200
      %v1315 = vpop.f32.mrb[0].mxu0
      %v1316 = vadd.f32 0.0, %v1315
      %v1317 = vpop.f32.mrb[0].mxu0
      %v1318 = vadd.f32 0.0, %v1317
      %1319 = vmatprep.mubr.f32.mxu0 0.0
      %1320 = vmatmul.mubr.f32.gmra.mrb[0].mxu0 %v1201
      %v1321 = vpop.f32.mrb[0].mxu0
      %v1322 = vadd.f32 0.0, %v1321
      %v1323 = vpop.f32.mrb[0].mxu0
      %v1324 = vadd.f32 0.0, %v1323
      %1325 = vmatprep.mubr.f32.mxu0 0.0
      %1326 = vmatmul.mubr.f32.gmra.mrb[0].mxu0 %v1202
      %v1327 = vpop.f32.mrb[0].mxu0
      %v1328 = vadd.f32 0.0, %v1327
      %v1329 = vpop.f32.mrb[0].mxu0
      %v1330 = vadd.f32 0.0, %v1329
      %1331 = vmatprep.mubr.f32.mxu0 0.0
      %1332 = vmatmul.mubr.f32.gmra.mrb[0].mxu0 %v1203
      %v1333 = vpop.f32.mrb[0].mxu0
      %v1334 = vadd.f32 0.0, %v1333
      %v1335 = vpop.f32.mrb[0].mxu0
      %v1336 = vadd.f32 0.0, %v1335
      %1337 = vmatprep.mubr.f32.mxu0 0.0
      %1338 = vmatmul.mubr.f32.gmra.mrb[0].mxu0 %v1204
      %v1339 = vpop.f32.mrb[0].mxu0
      %v1340 = vadd.f32 0.0, %v1339
      %v1341 = vpop.f32.mrb[0].mxu0
      %v1342 = vadd.f32 0.0, %v1341
      %1343 = vmatprep.mubr.f32.mxu0 0.0
      %1344 = vmatmul.mubr.f32.gmra.mrb[0].mxu0 %v1205
      %v1345 = vpop.f32.mrb[0].mxu0
      %v1346 = vadd.f32 0.0, %v1345
      %v1347 = vpop.f32.mrb[0].mxu0
      %v1348 = vadd.f32 0.0, %v1347
      %1349 = vmatprep.mubr.f32.mxu0 0.0
      %1350 = vmatmul.mubr.f32.gmra.mrb[0].mxu0 %v1206
      %v1351 = vpop.f32.mrb[0].mxu0
      %v1352 = vadd.f32 0.0, %v1351
      %v1353 = vpop.f32.mrb[0].mxu0
      %v1354 = vadd.f32 0.0, %v1353
      %1355 = vmatprep.mubr.f32.mxu0 0.0
      %1356 = vmatmul.mubr.f32.gmra.mrb[0].mxu0 %v1207
      %v1357 = vpop.f32.mrb[0].mxu0
      %v1358 = vadd.f32 0.0, %v1357
      %v1359 = vpop.f32.mrb[0].mxu0
      %v1360 = vadd.f32 0.0, %v1359
      %1361 = vmatprep.mubr.f32.mxu0 0.0
      %1362 = vmatmul.mubr.f32.gmra.mrb[0].mxu0 %v1208
      %v1363 = vpop.f32.mrb[0].mxu0
      %v1364 = vadd.f32 0.0, %v1363
      %v1365 = vpop.f32.mrb[0].mxu0
      %v1366 = vadd.f32 0.0, %v1365
      %1367 = vmatprep.mubr.f32.mxu0 0.0
      %1368 = vmatmul.mubr.f32.gmra.mrb[0].mxu0 %v1209
      %v1369 = vpop.f32.mrb[0].mxu0
      %v1370 = vadd.f32 0.0, %v1369
      %v1371 = vpop.f32.mrb[0].mxu0
      %v1372 = vadd.f32 0.0, %v1371
      %1373 = vmatprep.mubr.f32.mxu0 0.0
      %1374 = vmatmul.mubr.f32.gmra.mrb[0].mxu0 %v1210
      %v1375 = vpop.f32.mrb[0].mxu0
      %v1376 = vadd.f32 0.0, %v1375
      %v1377 = vpop.f32.mrb[0].mxu0
      %v1378 = vadd.f32 0.0, %v1377
      %1379 = vmatprep.mubr.f32.mxu0 0.0
      %1380 = vmatmul.mubr.f32.gmra.mrb[0].mxu0 %v1211
      %v1381 = vpop.f32.mrb[0].mxu0
      %v1382 = vadd.f32 0.0, %v1381
      %v1383 = vpop.f32.mrb[0].mxu0
      %v1384 = vadd.f32 0.0, %v1383
      %1385 = vmatprep.mubr.f32.mxu0 0.0
      %1386 = vmatmul.mubr.f32.gmra.mrb[0].mxu0 %v1212
      %v1387 = vpop.f32.mrb[0].mxu0
      %v1388 = vadd.f32 0.0, %v1387
      %v1389 = vpop.f32.mrb[0].mxu0
      %v1390 = vadd.f32 0.0, %v1389
      %1391 = vmatprep.mubr.f32.mxu0 0.0
      %1392 = vmatmul.mubr.f32.gmra.mrb[0].mxu0 %v1213
      %v1393 = vpop.f32.mrb[0].mxu0
      %v1394 = vadd.f32 0.0, %v1393
      %v1395 = vpop.f32.mrb[0].mxu0
      %v1396 = vadd.f32 0.0, %v1395
      %1397 = vmatprep.mubr.f32.mxu0 0.0
      %1398 = vmatmul.mubr.f32.gmra.mrb[0].mxu0 %v1214
      %v1399 = vpop.f32.mrb[0].mxu0
      %v1400 = vadd.f32 0.0, %v1399
      %v1401 = vpop.f32.mrb[0].mxu0
      %v1402 = vadd.f32 0.0, %v1401
      %1403 = vmatprep.mubr.f32.mxu0 0.0
      %1404 = vmatmul.mubr.f32.gmra.mrb[0].mxu0 %v1215
      %v1405 = vpop.f32.mrb[0].mxu0
      %v1406 = vadd.f32 0.0, %v1405
      %v1407 = vpop.f32.mrb[0].mxu0
      %v1408 = vadd.f32 0.0, %v1407
      %1409 = vdwg.mxu0
      %1410 = vmatprep.subr.mxu0 0.0
      %1411 = vmatpush1.msra.mxu0 %v1318
      %1412 = vmatprep.subr.mxu0 0.0
      %1413 = vmatpush1.msra.mxu0 %v1324
      %1414 = vmatprep.subr.mxu0 0.0
      %1415 = vmatpush1.msra.mxu0 %v1330
      %1416 = vmatprep.subr.mxu0 0.0
      %1417 = vmatpush1.msra.mxu0 %v1336
      %1418 = vmatprep.subr.mxu0 0.0
      %1419 = vmatpush1.msra.mxu0 %v1342
      %1420 = vmatprep.subr.mxu0 0.0
      %1421 = vmatpush1.msra.mxu0 %v1348
      %1422 = vmatprep.subr.mxu0 0.0
      %1423 = vmatpush1.msra.mxu0 %v1354
      %1424 = vmatprep.subr.mxu0 0.0
      %1425 = vmatpush1.msra.mxu0 %v1360
      %1426 = vmatprep.subr.mxu0 0.0
      %1427 = vmatpush1.msra.mxu0 %v1366
      %1428 = vmatprep.subr.mxu0 0.0
      %1429 = vmatpush1.msra.mxu0 %v1372
      %1430 = vmatprep.subr.mxu0 0.0
      %1431 = vmatpush1.msra.mxu0 %v1378
      %1432 = vmatprep.subr.mxu0 0.0
      %1433 = vmatpush1.msra.mxu0 %v1384
      %1434 = vmatprep.subr.mxu0 0.0
      %1435 = vmatpush1.msra.mxu0 %v1390
      %1436 = vmatprep.subr.mxu0 0.0
      %1437 = vmatpush1.msra.mxu0 %v1396
      %1438 = vmatprep.subr.mxu0 0.0
      %1439 = vmatpush1.msra.mxu0 %v1402
      %1440 = vmatprep.subr.mxu0 0.0
      %1441 = vmatpush1.msra.mxu0 %v1408
      %1442 = vmatprep.subr.mxu0 0.0
      %1443 = vmatpush1.msra.mxu0 0.0
      %1444 = vmatprep.subr.mxu0 0.0
      %1445 = vmatpush1.msra.mxu0 0.0
      %1446 = vmatprep.subr.mxu0 0.0
      %1447 = vmatpush1.msra.mxu0 0.0
      %1448 = vmatprep.subr.mxu0 0.0
      %1449 = vmatpush1.msra.mxu0 0.0
      %1450 = vmatprep.subr.mxu0 0.0
      %1451 = vmatpush1.msra.mxu0 0.0
      %1452 = vmatprep.subr.mxu0 0.0
      %1453 = vmatpush1.msra.mxu0 0.0
      %1454 = vmatprep.subr.mxu0 0.0
      %1455 = vmatpush1.msra.mxu0 0.0
      %1456 = vmatprep.subr.mxu0 0.0
      %1457 = vmatpush1.msra.mxu0 0.0
      %1458 = vmatprep.subr.mxu0 0.0
      %1459 = vmatpush1.msra.mxu0 0.0
      %1460 = vmatprep.subr.mxu0 0.0
      %1461 = vmatpush1.msra.mxu0 0.0
      %1462 = vmatprep.subr.mxu0 0.0
      %1463 = vmatpush1.msra.mxu0 0.0
      %1464 = vmatprep.subr.mxu0 0.0
      %1465 = vmatpush1.msra.mxu0 0.0
      %1466 = vmatprep.subr.mxu0 0.0
      %1467 = vmatpush1.msra.mxu0 0.0
      %1468 = vmatprep.subr.mxu0 0.0
      %1469 = vmatpush1.msra.mxu0 0.0
      %1470 = vmatprep.subr.mxu0 0.0
      %1471 = vmatpush1.msra.mxu0 0.0
      %1472 = vmatprep.subr.mxu0 0.0
      %1473 = vmatpush1.msra.mxu0 0.0
      %1474 = vmatprep.mubr.f32.mxu0 0.0
      %1475 = vmatmul.mubr.f32.gmra.mrb[0].mxu0 %v398
      %v1476 = vpop.f32.mrb[0].mxu0
      %v1477 = vadd.f32 0.0, %v1476
      %v1478 = vpop.f32.mrb[0].mxu0
      %1479 = vmatprep.mubr.f32.mxu0 0.0
      %1480 = vmatmul.mubr.f32.gmra.mrb[0].mxu0 %v399
      %v1481 = vpop.f32.mrb[0].mxu0
      %v1482 = vadd.f32 0.0, %v1481
      %v1483 = vpop.f32.mrb[0].mxu0
      %1484 = vmatprep.mubr.f32.mxu0 0.0
      %1485 = vmatmul.mubr.f32.gmra.mrb[0].mxu0 %v400
      %v1486 = vpop.f32.mrb[0].mxu0
      %v1487 = vadd.f32 0.0, %v1486
      %v1488 = vpop.f32.mrb[0].mxu0
      %1489 = vmatprep.mubr.f32.mxu0 0.0
      %1490 = vmatmul.mubr.f32.gmra.mrb[0].mxu0 %v401
      %v1491 = vpop.f32.mrb[0].mxu0
      %v1492 = vadd.f32 0.0, %v1491
      %v1493 = vpop.f32.mrb[0].mxu0
      %1494 = vmatprep.mubr.f32.mxu0 0.0
      %1495 = vmatmul.mubr.f32.gmra.mrb[0].mxu0 %v402
      %v1496 = vpop.f32.mrb[0].mxu0
      %v1497 = vadd.f32 0.0, %v1496
      %v1498 = vpop.f32.mrb[0].mxu0
      %1499 = vmatprep.mubr.f32.mxu0 0.0
      %1500 = vmatmul.mubr.f32.gmra.mrb[0].mxu0 %v403
      %v1501 = vpop.f32.mrb[0].mxu0
      %v1502 = vadd.f32 0.0, %v1501
      %v1503 = vpop.f32.mrb[0].mxu0
      %1504 = vmatprep.mubr.f32.mxu0 0.0
      %1505 = vmatmul.mubr.f32.gmra.mrb[0].mxu0 %v404
      %v1506 = vpop.f32.mrb[0].mxu0
      %v1507 = vadd.f32 0.0, %v1506
      %v1508 = vpop.f32.mrb[0].mxu0
      %1509 = vmatprep.mubr.f32.mxu0 0.0
      %1510 = vmatmul.mubr.f32.gmra.mrb[0].mxu0 %v405
      %v1511 = vpop.f32.mrb[0].mxu0
      %v1512 = vadd.f32 0.0, %v1511
      %v1513 = vpop.f32.mrb[0].mxu0
      %1514 = vmatprep.mubr.f32.mxu0 0.0
      %1515 = vmatmul.mubr.f32.gmra.mrb[0].mxu0 %v406
      %v1516 = vpop.f32.mrb[0].mxu0
      %v1517 = vadd.f32 0.0, %v1516
      %v1518 = vpop.f32.mrb[0].mxu0
      %1519 = vmatprep.mubr.f32.mxu0 0.0
      %1520 = vmatmul.mubr.f32.gmra.mrb[0].mxu0 %v407
      %v1521 = vpop.f32.mrb[0].mxu0
      %v1522 = vadd.f32 0.0, %v1521
      %v1523 = vpop.f32.mrb[0].mxu0
      %1524 = vmatprep.mubr.f32.mxu0 0.0
      %1525 = vmatmul.mubr.f32.gmra.mrb[0].mxu0 %v408
      %v1526 = vpop.f32.mrb[0].mxu0
      %v1527 = vadd.f32 0.0, %v1526
      %v1528 = vpop.f32.mrb[0].mxu0
      %1529 = vmatprep.mubr.f32.mxu0 0.0
      %1530 = vmatmul.mubr.f32.gmra.mrb[0].mxu0 %v409
      %v1531 = vpop.f32.mrb[0].mxu0
      %v1532 = vadd.f32 0.0, %v1531
      %v1533 = vpop.f32.mrb[0].mxu0
      %1534 = vmatprep.mubr.f32.mxu0 0.0
      %1535 = vmatmul.mubr.f32.gmra.mrb[0].mxu0 %v410
      %v1536 = vpop.f32.mrb[0].mxu0
      %v1537 = vadd.f32 0.0, %v1536
      %v1538 = vpop.f32.mrb[0].mxu0
      %1539 = vmatprep.mubr.f32.mxu0 0.0
      %1540 = vmatmul.mubr.f32.gmra.mrb[0].mxu0 %v411
      %v1541 = vpop.f32.mrb[0].mxu0
      %v1542 = vadd.f32 0.0, %v1541
      %v1543 = vpop.f32.mrb[0].mxu0
      %1544 = vmatprep.mubr.f32.mxu0 0.0
      %1545 = vmatmul.mubr.f32.gmra.mrb[0].mxu0 %v412
      %v1546 = vpop.f32.mrb[0].mxu0
      %v1547 = vadd.f32 0.0, %v1546
      %v1548 = vpop.f32.mrb[0].mxu0
      %1549 = vmatprep.mubr.f32.mxu0 0.0
      %1550 = vmatmul.mubr.f32.gmra.mrb[0].mxu0 %v413
      %v1551 = vpop.f32.mrb[0].mxu0
      %v1552 = vadd.f32 0.0, %v1551
      %v1553 = vpop.f32.mrb[0].mxu0
      %1554 = vdwg.mxu0
      %v1555 = vadd.f32 %v1316, %v1477
      %v1556 = vadd.f32 %v1322, %v1482
      %v1557 = vadd.f32 %v1328, %v1487
      %v1558 = vadd.f32 %v1334, %v1492
      %v1559 = vadd.f32 %v1340, %v1497
      %v1560 = vadd.f32 %v1346, %v1502
      %v1561 = vadd.f32 %v1352, %v1507
      %v1562 = vadd.f32 %v1358, %v1512
      %v1563 = vadd.f32 %v1364, %v1517
      %v1564 = vadd.f32 %v1370, %v1522
      %v1565 = vadd.f32 %v1376, %v1527
      %v1566 = vadd.f32 %v1382, %v1532
      %v1567 = vadd.f32 %v1388, %v1537
      %v1568 = vadd.f32 %v1394, %v1542
      %v1569 = vadd.f32 %v1400, %v1547
      %v1570 = vadd.f32 %v1406, %v1552
      %v1572 = vlaneseq
      %v1573 = vshrl.u32 %v1572, 7
      %v1574 = vsub.s32 0, %v1573
      %v1575 = vrot.slane %v1248, %v1574
      %v1577 = vadd.f32 %v1555, %v1575
      %v1578 = vadd.f32 %v1556, %v1575
      %v1579 = vadd.f32 %v1557, %v1575
      %v1580 = vadd.f32 %v1558, %v1575
      %v1581 = vadd.f32 %v1559, %v1575
      %v1582 = vadd.f32 %v1560, %v1575
      %v1583 = vadd.f32 %v1561, %v1575
      %v1584 = vadd.f32 %v1562, %v1575
      %v1585 = vadd.f32 %v1563, %v1575
      %v1586 = vadd.f32 %v1564, %v1575
      %v1587 = vadd.f32 %v1565, %v1575
      %v1588 = vadd.f32 %v1566, %v1575
      %v1589 = vadd.f32 %v1567, %v1575
      %v1590 = vadd.f32 %v1568, %v1575
      %v1591 = vadd.f32 %v1569, %v1575
      %v1592 = vadd.f32 %v1570, %v1575
      %v1593 = vmax.f32 %v1577, 0.0
      %v1594 = vmax.f32 %v1578, 0.0
      %v1595 = vmax.f32 %v1579, 0.0
      %v1596 = vmax.f32 %v1580, 0.0
      %v1597 = vmax.f32 %v1581, 0.0
      %v1598 = vmax.f32 %v1582, 0.0
      %v1599 = vmax.f32 %v1583, 0.0
      %v1600 = vmax.f32 %v1584, 0.0
      %v1601 = vmax.f32 %v1585, 0.0
      %v1602 = vmax.f32 %v1586, 0.0
      %v1603 = vmax.f32 %v1587, 0.0
      %v1604 = vmax.f32 %v1588, 0.0
      %v1605 = vmax.f32 %v1589, 0.0
      %v1606 = vmax.f32 %v1590, 0.0
      %v1607 = vmax.f32 %v1591, 0.0
      %v1608 = vmax.f32 %v1592, 0.0
      %v1609 = vmax.f32 %v1593, %v1594
      %v1610 = vrot.slane %v1609, 4
      %v1611 = vmax.f32 %v1609, %v1610
      %v1612 = vrot.slane %v1611, 2
      %v1613 = vmax.f32 %v1611, %v1612
      %v1614 = vrot.slane %v1613, 1
      %v1615 = vmax.f32 %v1613, %v1614
      %v1616 = vmax.f32 %v1595, %v1596
      %v1617 = vrot.slane %v1616, 4
      %v1618 = vmax.f32 %v1616, %v1617
      %v1619 = vrot.slane %v1618, 2
      %v1620 = vmax.f32 %v1618, %v1619
      %v1621 = vrot.slane %v1620, 1
      %v1622 = vmax.f32 %v1620, %v1621
      %v1623 = vmax.f32 %v1597, %v1598
      %v1624 = vrot.slane %v1623, 4
      %v1625 = vmax.f32 %v1623, %v1624
      %v1626 = vrot.slane %v1625, 2
      %v1627 = vmax.f32 %v1625, %v1626
      %v1628 = vrot.slane %v1627, 1
      %v1629 = vmax.f32 %v1627, %v1628
      %v1630 = vmax.f32 %v1599, %v1600
      %v1631 = vrot.slane %v1630, 4
      %v1632 = vmax.f32 %v1630, %v1631
      %v1633 = vrot.slane %v1632, 2
      %v1634 = vmax.f32 %v1632, %v1633
      %v1635 = vrot.slane %v1634, 1
      %v1636 = vmax.f32 %v1634, %v1635
      %v1637 = vmax.f32 %v1601, %v1602
      %v1638 = vrot.slane %v1637, 4
      %v1639 = vmax.f32 %v1637, %v1638
      %v1640 = vrot.slane %v1639, 2
      %v1641 = vmax.f32 %v1639, %v1640
      %v1642 = vrot.slane %v1641, 1
      %v1643 = vmax.f32 %v1641, %v1642
      %v1644 = vmax.f32 %v1603, %v1604
      %v1645 = vrot.slane %v1644, 4
      %v1646 = vmax.f32 %v1644, %v1645
      %v1647 = vrot.slane %v1646, 2
      %v1648 = vmax.f32 %v1646, %v1647
      %v1649 = vrot.slane %v1648, 1
      %v1650 = vmax.f32 %v1648, %v1649
      %v1651 = vmax.f32 %v1605, %v1606
      %v1652 = vrot.slane %v1651, 4
      %v1653 = vmax.f32 %v1651, %v1652
      %v1654 = vrot.slane %v1653, 2
      %v1655 = vmax.f32 %v1653, %v1654
      %v1656 = vrot.slane %v1655, 1
      %v1657 = vmax.f32 %v1655, %v1656
      %v1658 = vmax.f32 %v1607, %v1608
      %v1659 = vrot.slane %v1658, 4
      %v1660 = vmax.f32 %v1658, %v1659
      %v1661 = vrot.slane %v1660, 2
      %v1662 = vmax.f32 %v1660, %v1661
      %v1663 = vrot.slane %v1662, 1
      %v1664 = vmax.f32 %v1662, %v1663
      %v1665 = vadd.f32 %v1593, %v1594
      %v1666 = vrot.slane %v1665, 4
      %v1667 = vadd.f32 %v1665, %v1666
      %v1668 = vrot.slane %v1667, 2
      %v1669 = vadd.f32 %v1667, %v1668
      %v1670 = vrot.slane %v1669, 1
      %v1671 = vadd.f32 %v1669, %v1670
      %v1672 = vadd.f32 %v1595, %v1596
      %v1673 = vrot.slane %v1672, 4
      %v1674 = vadd.f32 %v1672, %v1673
      %v1675 = vrot.slane %v1674, 2
      %v1676 = vadd.f32 %v1674, %v1675
      %v1677 = vrot.slane %v1676, 1
      %v1678 = vadd.f32 %v1676, %v1677
      %v1679 = vadd.f32 %v1597, %v1598
      %v1680 = vrot.slane %v1679, 4
      %v1681 = vadd.f32 %v1679, %v1680
      %v1682 = vrot.slane %v1681, 2
      %v1683 = vadd.f32 %v1681, %v1682
      %v1684 = vrot.slane %v1683, 1
      %v1685 = vadd.f32 %v1683, %v1684
      %v1686 = vadd.f32 %v1599, %v1600
      %v1687 = vrot.slane %v1686, 4
      %v1688 = vadd.f32 %v1686, %v1687
      %v1689 = vrot.slane %v1688, 2
      %v1690 = vadd.f32 %v1688, %v1689
      %v1691 = vrot.slane %v1690, 1
      %v1692 = vadd.f32 %v1690, %v1691
      %v1693 = vadd.f32 %v1601, %v1602
      %v1694 = vrot.slane %v1693, 4
      %v1695 = vadd.f32 %v1693, %v1694
      %v1696 = vrot.slane %v1695, 2
      %v1697 = vadd.f32 %v1695, %v1696
      %v1698 = vrot.slane %v1697, 1
      %v1699 = vadd.f32 %v1697, %v1698
      %v1700 = vadd.f32 %v1603, %v1604
      %v1701 = vrot.slane %v1700, 4
      %v1702 = vadd.f32 %v1700, %v1701
      %v1703 = vrot.slane %v1702, 2
      %v1704 = vadd.f32 %v1702, %v1703
      %v1705 = vrot.slane %v1704, 1
      %v1706 = vadd.f32 %v1704, %v1705
      %v1707 = vadd.f32 %v1605, %v1606
      %v1708 = vrot.slane %v1707, 4
      %v1709 = vadd.f32 %v1707, %v1708
      %v1710 = vrot.slane %v1709, 2
      %v1711 = vadd.f32 %v1709, %v1710
      %v1712 = vrot.slane %v1711, 1
      %v1713 = vadd.f32 %v1711, %v1712
      %v1714 = vadd.f32 %v1607, %v1608
      %v1715 = vrot.slane %v1714, 4
      %v1716 = vadd.f32 %v1714, %v1715
      %v1717 = vrot.slane %v1716, 2
      %v1718 = vadd.f32 %v1716, %v1717
      %v1719 = vrot.slane %v1718, 1
      %v1720 = vadd.f32 %v1718, %v1719
      %v1721 = vmul.f32 %v1671, 0.0625
      %v1722 = vmul.f32 %v1678, 0.0625
      %v1723 = vmul.f32 %v1685, 0.0625
      %v1724 = vmul.f32 %v1692, 0.0625
      %v1725 = vmul.f32 %v1699, 0.0625
      %v1726 = vmul.f32 %v1706, 0.0625
      %v1727 = vmul.f32 %v1713, 0.0625
      %v1728 = vmul.f32 %v1720, 0.0625
      %vm1737 = vcmask 1041409
      %v1738 = vsel %vm1737, %v1622, %v1615
      %vm1739 = vcmask 1042434
      %v1740 = vsel %vm1739, %v1629, %v1738
      %vm1741 = vcmask 1043459
      %v1742 = vsel %vm1741, %v1636, %v1740
      %vm1743 = vcmask 1044484
      %v1744 = vsel %vm1743, %v1643, %v1742
      %vm1745 = vcmask 1045509
      %v1746 = vsel %vm1745, %v1650, %v1744
      %vm1747 = vcmask 1046534
      %v1748 = vsel %vm1747, %v1657, %v1746
      %vm1749 = vcmask 1047559
      %v1750 = vsel %vm1749, %v1664, %v1748
      %v1760 = vsel %vm1737, %v1722, %v1721
      %v1761 = vsel %vm1739, %v1723, %v1760
      %v1762 = vsel %vm1741, %v1724, %v1761
      %v1763 = vsel %vm1743, %v1725, %v1762
      %v1764 = vsel %vm1745, %v1726, %v1763
      %v1765 = vsel %vm1747, %v1727, %v1764
      %v1766 = vsel %vm1749, %v1728, %v1765
      %v1768 = vld [vmem:[%s8] sm:$0xff]
      %v1769 = vld [vmem:[%s8 + $0x8] sm:$0xff]
      %v1770 = vld [vmem:[%s8 + $0x10] sm:$0xff]
      %v1771 = vld [vmem:[%s8 + $0x18] sm:$0xff]
      %v1772 = vld [vmem:[%s8 + $0x20] sm:$0xff]
      %v1773 = vld [vmem:[%s8 + $0x28] sm:$0xff]
      %v1774 = vld [vmem:[%s8 + $0x30] sm:$0xff]
      %v1775 = vld [vmem:[%s8 + $0x38] sm:$0xff]
      %v1776 = vld [vmem:[%s8 + $0x40] sm:$0xff]
      %v1777 = vld [vmem:[%s8 + $0x48] sm:$0xff]
      %v1778 = vld [vmem:[%s8 + $0x50] sm:$0xff]
      %v1779 = vld [vmem:[%s8 + $0x58] sm:$0xff]
      %v1780 = vld [vmem:[%s8 + $0x60] sm:$0xff]
      %v1781 = vld [vmem:[%s8 + $0x68] sm:$0xff]
      %v1782 = vld [vmem:[%s8 + $0x70] sm:$0xff]
      %v1783 = vld [vmem:[%s8 + $0x78] sm:$0xff]
      %v1784 = vld [vmem:[%s8 + $0x80] sm:$0xff]
      %v1785 = vld [vmem:[%s8 + $0x88] sm:$0xff]
      %v1786 = vld [vmem:[%s8 + $0x90] sm:$0xff]
      %v1787 = vld [vmem:[%s8 + $0x98] sm:$0xff]
      %v1788 = vld [vmem:[%s8 + $0xa0] sm:$0xff]
      %v1789 = vld [vmem:[%s8 + $0xa8] sm:$0xff]
      %v1790 = vld [vmem:[%s8 + $0xb0] sm:$0xff]
      %v1791 = vld [vmem:[%s8 + $0xb8] sm:$0xff]
      %v1792 = vld [vmem:[%s8 + $0xc0] sm:$0xff]
      %v1793 = vld [vmem:[%s8 + $0xc8] sm:$0xff]
      %v1794 = vld [vmem:[%s8 + $0xd0] sm:$0xff]
      %v1795 = vld [vmem:[%s8 + $0xd8] sm:$0xff]
      %v1796 = vld [vmem:[%s8 + $0xe0] sm:$0xff]
      %v1797 = vld [vmem:[%s8 + $0xe8] sm:$0xff]
      %v1798 = vld [vmem:[%s8 + $0xf0] sm:$0xff]
      %v1799 = vld [vmem:[%s8 + $0xf8] sm:$0xff]
      %v1800 = vld [vmem:[%s9] sm:$0x1]
      %v1802 = vlaneseq
      %v1803 = vshrl.u32 %v1802, 7
      %v1804 = vsub.s32 0, %v1803
      %v1805 = vrot.slane %v1800, %v1804
      %1807 = vmatprep.subr.mxu0 0.0
      %1808 = vmatpush1.msra.mxu0 %v1768
      %1809 = vmatprep.subr.mxu0 0.0
      %1810 = vmatpush1.msra.mxu0 %v1769
      %1811 = vmatprep.subr.mxu0 0.0
      %1812 = vmatpush1.msra.mxu0 %v1770
      %1813 = vmatprep.subr.mxu0 0.0
      %1814 = vmatpush1.msra.mxu0 %v1771
      %1815 = vmatprep.subr.mxu0 0.0
      %1816 = vmatpush1.msra.mxu0 %v1772
      %1817 = vmatprep.subr.mxu0 0.0
      %1818 = vmatpush1.msra.mxu0 %v1773
      %1819 = vmatprep.subr.mxu0 0.0
      %1820 = vmatpush1.msra.mxu0 %v1774
      %1821 = vmatprep.subr.mxu0 0.0
      %1822 = vmatpush1.msra.mxu0 %v1775
      %1823 = vmatprep.subr.mxu0 0.0
      %1824 = vmatpush1.msra.mxu0 %v1776
      %1825 = vmatprep.subr.mxu0 0.0
      %1826 = vmatpush1.msra.mxu0 %v1777
      %1827 = vmatprep.subr.mxu0 0.0
      %1828 = vmatpush1.msra.mxu0 %v1778
      %1829 = vmatprep.subr.mxu0 0.0
      %1830 = vmatpush1.msra.mxu0 %v1779
      %1831 = vmatprep.subr.mxu0 0.0
      %1832 = vmatpush1.msra.mxu0 %v1780
      %1833 = vmatprep.subr.mxu0 0.0
      %1834 = vmatpush1.msra.mxu0 %v1781
      %1835 = vmatprep.subr.mxu0 0.0
      %1836 = vmatpush1.msra.mxu0 %v1782
      %1837 = vmatprep.subr.mxu0 0.0
      %1838 = vmatpush1.msra.mxu0 %v1783
      %1839 = vmatprep.subr.mxu0 0.0
      %1840 = vmatpush1.msra.mxu0 %v1784
      %1841 = vmatprep.subr.mxu0 0.0
      %1842 = vmatpush1.msra.mxu0 %v1785
      %1843 = vmatprep.subr.mxu0 0.0
      %1844 = vmatpush1.msra.mxu0 %v1786
      %1845 = vmatprep.subr.mxu0 0.0
      %1846 = vmatpush1.msra.mxu0 %v1787
      %1847 = vmatprep.subr.mxu0 0.0
      %1848 = vmatpush1.msra.mxu0 %v1788
      %1849 = vmatprep.subr.mxu0 0.0
      %1850 = vmatpush1.msra.mxu0 %v1789
      %1851 = vmatprep.subr.mxu0 0.0
      %1852 = vmatpush1.msra.mxu0 %v1790
      %1853 = vmatprep.subr.mxu0 0.0
      %1854 = vmatpush1.msra.mxu0 %v1791
      %1855 = vmatprep.subr.mxu0 0.0
      %1856 = vmatpush1.msra.mxu0 %v1792
      %1857 = vmatprep.subr.mxu0 0.0
      %1858 = vmatpush1.msra.mxu0 %v1793
      %1859 = vmatprep.subr.mxu0 0.0
      %1860 = vmatpush1.msra.mxu0 %v1794
      %1861 = vmatprep.subr.mxu0 0.0
      %1862 = vmatpush1.msra.mxu0 %v1795
      %1863 = vmatprep.subr.mxu0 0.0
      %1864 = vmatpush1.msra.mxu0 %v1796
      %1865 = vmatprep.subr.mxu0 0.0
      %1866 = vmatpush1.msra.mxu0 %v1797
      %1867 = vmatprep.subr.mxu0 0.0
      %1868 = vmatpush1.msra.mxu0 %v1798
      %1869 = vmatprep.subr.mxu0 0.0
      %1870 = vmatpush1.msra.mxu0 %v1799
      %1871 = vmatprep.mubr.f32.mxu0 %v1766
      %1872 = vmatmul.mubr.f32.gmra.mrb[0].mxu0 %v1750
      %v1873 = vpop.f32.mrb[0].mxu0
      %v1874 = vadd.f32 %v1805, %v1873
      %v1875 = vpop.f32.mrb[0].mxu0
      %1876 = vdwg.mxu0
      %1877 = vst [vmem:[%s381] sm:$0xff] %v1874
      %p1878 = scmp.lt.s32.totalorder %s21, 1
      %s1879 = scalar_select %p1878, %s21, 1
      %s1880 = smul.addr %s1879, 8
      %s1881 = scalar_lea.vmem %s10, %s1880
      // Predicated region
      $region61: #{graph_gnn_forward_batched.1} parent=59 // pred_check
        %p1882 = pneg %p259
      $region62: #{graph_gnn_forward_batched.1} parent=59 // pred_check_branch
        %1884 = sbr.rel (%p1882) target = $region64
      $region63: #{graph_gnn_forward_batched.1} parent=59 // pred_region
        _
      $region64: #{graph_gnn_forward_batched.1} parent=59 // pred_fallthru
        _
    $region60: #{graph_gnn_forward_batched.1} parent=5 // pred_fallthru
      _
    %p1885 = scmp.le.s32.totalorder 2, %s16
    // Predicated region
    $region65: #{graph_gnn_forward_batched.1} parent=5 // pred_check
      %p1886 = pneg %p1885
    $region66: #{graph_gnn_forward_batched.1} parent=5 // pred_check_branch
      %1888 = sbr.rel (%p1886) target = $region68
    $region67: #{graph_gnn_forward_batched.1} parent=5 // pred_region
      %s1889 = ssub.s32 %s16, 2
      // Predicated region
      $region69: #{graph_gnn_forward_batched.1} parent=67 // pred_check
        %p1890 = pneg %p265
      $region70: #{graph_gnn_forward_batched.1} parent=67 // pred_check_branch
        %1892 = sbr.rel (%p1890) target = $region72
      $region71: #{graph_gnn_forward_batched.1} parent=67 // pred_region
        %p1893 = scmp.lt.s32.totalorder %s22, 1
        %s1894 = scalar_select %p1893, %s22, 1
        %s1895 = smul.addr %s1894, 8
        %s1896 = scalar_lea.vmem %s10, %s1895
      $region72: #{graph_gnn_forward_batched.1} parent=67 // pred_fallthru
        _
    $region68: #{graph_gnn_forward_batched.1} parent=5 // pred_fallthru
      _
  $region6: #{graph_gnn_forward_batched.1} parent=0 // loop_footer
    %s20 = sadd.s32 1, %s16
  $region7: #{graph_gnn_forward_batched.1} parent=0 // loop_footer_branch
    %15 = sbr.rel target = $region3
  $region8: #{graph_gnn_forward_batched.1} parent=0 // loop_exit
    _

</llo_original>
